<compile_context>
chip_gen: v7x
topology: tpu7x:2x2x1
jax: 0.10.0
libtpu: 0.0.40
codegen_flags: <defaults>
</compile_context>

<pallas_src>
import functools

import jax
import jax.numpy as jnp
from jax.experimental import pallas as pl
from jax.experimental.pallas import tpu as pltpu


def _copeft_kernel(x_ref, lh_ref, rh_ref, wu_ref, bu_ref, wd_ref, bd_ref, o_ref,
                   *, TL, pad, k_max, C_in, F_total, L, n_lt):
    """One (batch, L-tile) grid step.

    x_ref  : (1, TL, F_total)       original activations (adapted + pass-through)
    lh_ref : (1, 1, hp, C_in) bf16  left  halo rows (zero outside the sequence)
    rh_ref : (1, 1, hp, C_in) bf16  right halo rows (zero outside the sequence)
    wu_ref : (k_max, C_in, H_pad) bf16 fused per-tap up-conv weights
    bu_ref : (1, H_pad) f32         fused up-conv bias
    wd_ref : (H_pad, C_in) bf16     1x1 down-projection weight
    bd_ref : (1, C_in) f32          down-projection bias
    o_ref  : (1, TL, F_total)       output tile
    """
    lt = pl.program_id(1)

    xb = x_ref[0]                                     # (TL, F_total)
    body = xb[:, :C_in].astype(jnp.bfloat16)          # adapted lanes, MXU dtype

    # A partial last tile carries garbage rows past L: zero them so the 'same'
    # zero padding of the conv stays correct for the last valid rows.
    if n_lt * TL != L:
        rows = jax.lax.broadcasted_iota(jnp.int32, (TL, 1), 0) + lt * TL
        body = jnp.where(rows < L, body, jnp.zeros_like(body))

    if pad > 0:
        window = jnp.concatenate([lh_ref[0, 0], body, rh_ref[0, 0]], axis=0)
    else:
        window = body                                 # (TL + 2*pad, C_in) bf16

    # Per-tap MXU accumulation (f32 accumulator), no im2col concat.
    h = jnp.dot(window[0:TL, :], wu_ref[0], preferred_element_type=jnp.float32)
    for t in range(1, k_max):
        h = h + jnp.dot(window[t:t + TL, :], wu_ref[t],
                        preferred_element_type=jnp.float32)
    h = jnp.maximum(h + bu_ref[...], 0.0)             # bias + ReLU in f32

    y = jnp.dot(h.astype(wd_ref.dtype), wd_ref[...],
                preferred_element_type=jnp.float32) + bd_ref[...]
    y = y.astype(o_ref.dtype)

    # Sliced stores: no (TL, F_total) concat / relayout of the full tile.
    o_ref[0, :, 0:C_in] = y
    if C_in != F_total:
        o_ref[0, :, C_in:] = xb[:, C_in:]             # pass-through lanes


def _const_spec(shape, single_buffer):
    """BlockSpec for a grid-invariant operand, optionally single-buffered."""
    ndim = len(shape)
    index_map = lambda b, l, _n=ndim: (0,) * _n
    if single_buffer:
        try:
            return pl.BlockSpec(shape, index_map,
                                pipeline_mode=pl.Buffered(buffer_count=1))
        except (TypeError, AttributeError):
            pass
    return pl.BlockSpec(shape, index_map)


def _auto_vmem_budget():
    """(default max L-tile, vmem_limit_bytes) derived from physical VMEM so the
    kernel is roomy on v5e/v6e (128 MiB) and safe on v7x (64 MiB)."""
    try:
        cap = int(pltpu.get_tpu_info().vmem_capacity_bytes)
    except Exception:
        cap = 64 * 1024 * 1024                        # conservative fallback
    if cap >= 96 * 1024 * 1024:
        tile_l, limit = 1024, 96 * 1024 * 1024
    else:
        tile_l, limit = 512, 40 * 1024 * 1024
    return tile_l, min(limit, (cap * 3) // 4)


@functools.partial(
    jax.jit,
    static_argnames=("in_features", "k_max", "tile_l", "vmem_limit",
                     "single_buffer_weights"))
def _copeft_forward(x, w_up, b_up, w_dn, b_dn, *, in_features, k_max,
                    tile_l, vmem_limit, single_buffer_weights):
    B, L, F_total = x.shape
    C_in = in_features
    H_pad = w_up.shape[-1]
    pad = (k_max - 1) // 2
    hp = max(pad, 1)

    TL = min(tile_l, L)
    n_lt = -(-L // TL)

    # Tiny halo side-arrays: the `pad` rows left / right of every tile, gathered
    # straight from x (small read) and zero-masked where they fall outside
    # [0, L).  Replaces the previous full padded bf16 snapshot of the slice.
    if pad > 0:
        starts = jnp.arange(n_lt, dtype=jnp.int32) * TL
        offs = jnp.arange(pad, dtype=jnp.int32)

        def halo_rows(idx):
            flat = idx.reshape(-1)
            valid = (flat >= 0) & (flat < L)
            rows = jnp.take(x, jnp.clip(flat, 0, L - 1), axis=1)[..., :C_in]
            rows = jnp.where(valid[None, :, None], rows, 0).astype(jnp.bfloat16)
            return rows.reshape(B, n_lt, pad, C_in)

        lh = halo_rows(starts[:, None] - pad + offs[None, :])
        rh = halo_rows(starts[:, None] + TL + offs[None, :])
    else:
        lh = jnp.zeros((B, n_lt, hp, C_in), jnp.bfloat16)
        rh = lh

    kernel = functools.partial(
        _copeft_kernel, TL=TL, pad=pad, k_max=k_max, C_in=C_in,
        F_total=F_total, L=L, n_lt=n_lt)

    itemsize = jnp.dtype(x.dtype).itemsize
    flops = 2 * B * n_lt * TL * (k_max * C_in * H_pad + H_pad * C_in)
    bytes_accessed = (2 * B * L * F_total * itemsize          # x in + out
                      + (lh.size + rh.size) * 2               # halo rows
                      + (w_up.size + w_dn.size) * 2
                      + (b_up.size + b_dn.size) * 4)

    return pl.pallas_call(
        kernel,
        out_shape=jax.ShapeDtypeStruct((B, L, F_total), x.dtype),
        grid=(B, n_lt),
        in_specs=[
            pl.BlockSpec((1, TL, F_total), lambda b, l: (b, l, 0)),      # x
            pl.BlockSpec((1, 1, hp, C_in), lambda b, l: (b, l, 0, 0)),   # left halo
            pl.BlockSpec((1, 1, hp, C_in), lambda b, l: (b, l, 0, 0)),   # right halo
            _const_spec(w_up.shape, single_buffer_weights),
            _const_spec(b_up.shape, single_buffer_weights),
            _const_spec(w_dn.shape, single_buffer_weights),
            _const_spec(b_dn.shape, single_buffer_weights),
        ],
        out_specs=pl.BlockSpec((1, TL, F_total), lambda b, l: (b, l, 0)),
        compiler_params=pltpu.CompilerParams(
            dimension_semantics=("parallel", "parallel"),
            vmem_limit_bytes=vmem_limit),
        cost_estimate=pl.CostEstimate(
            flops=flops, transcendentals=0, bytes_accessed=bytes_accessed),
    )(x, lh, rh, w_up, b_up, w_dn, b_dn)


_SINGLE_BUFFER_WEIGHTS_OK = None   # cached: does pl.Buffered(1) lower cleanly?


class COPEFTBlock:
    """JAX/Pallas port of coperception.peft.COPEFTBlock (forward only)."""

    def __init__(self, in_features, out_features, kernel_sizes=(1, 3, 5),
                 aggregation='concatenate', key=None):
        assert aggregation in ('sum', 'mean', 'concatenate')
        kernel_sizes = list(kernel_sizes)
        if 1 not in kernel_sizes:
            kernel_sizes = [1] + kernel_sizes
        # TODO(synk): PyTorch 'same' padding for even kernel sizes pads
        # asymmetrically; only odd sizes are supported here (default is 1/3/5).
        assert all(isinstance(k, int) and k >= 1 and k % 2 == 1
                   for k in kernel_sizes), "only odd kernel sizes supported"

        self.in_features = in_features
        self.out_features = out_features
        self.kernel_sizes = kernel_sizes
        self.aggregation = aggregation
        n = len(kernel_sizes)
        hidden = out_features * n if aggregation == 'concatenate' else out_features
        self.hidden = hidden
        self.k_max = max(kernel_sizes)

        if key is None:
            key = jax.random.PRNGKey(0)

        # Per-branch parameters (shapes follow nn.Conv1d; values synthetic).
        self.up_w, self.up_b = [], []
        for k in kernel_sizes:
            key, kw, kb = jax.random.split(key, 3)
            bound = 1.0 / float(in_features * k) ** 0.5
            self.up_w.append(jax.random.uniform(
                kw, (k, in_features, out_features), jnp.float32, -bound, bound))
            self.up_b.append(jax.random.uniform(
                kb, (1, out_features), jnp.float32, -bound, bound))
        key, kw, kb = jax.random.split(key, 3)
        bound = 1.0 / float(hidden) ** 0.5
        self.down_w = jax.random.uniform(kw, (hidden, in_features), jnp.float32,
                                         -bound, bound)
        self.down_b = jax.random.uniform(kb, (1, in_features), jnp.float32,
                                         -bound, bound)

        # Host-side fusion of all branch weights into per-tap matmul operands,
        # with hidden zero-padded to a lane-dense multiple of 128.
        # TODO(synk): C_in itself is not padded to 128; tiny adapters keep
        # masked stores on the output lanes (correct, slightly slower).
        k_max, pad = self.k_max, (self.k_max - 1) // 2
        H_pad = -(-hidden // 128) * 128
        self.hidden_padded = H_pad
        wf = jnp.zeros((k_max, in_features, H_pad), jnp.float32)
        bf = jnp.zeros((1, H_pad), jnp.float32)
        scale = (1.0 / n) if aggregation == 'mean' else 1.0
        for i, k in enumerate(kernel_sizes):
            left = (k - 1) // 2
            if aggregation == 'concatenate':
                cols = slice(i * out_features, (i + 1) * out_features)
            else:
                cols = slice(0, out_features)
            for t in range(k):
                wf = wf.at[t - left + pad, :, cols].add(self.up_w[i][t] * scale)
            bf = bf.at[:, cols].add(self.up_b[i] * scale)
        self.w_fused = wf.astype(jnp.bfloat16)            # (k_max, C_in, H_pad)
        self.b_fused = bf                                  # (1, H_pad) f32
        wd = jnp.zeros((H_pad, in_features), jnp.float32)
        wd = wd.at[:hidden, :].set(self.down_w)
        self.w_down_lo = wd.astype(jnp.bfloat16)           # (H_pad, C_in)

    def _choose_tiling(self, L, F_total, max_tile_l):
        auto_tl, vmem_limit = _auto_vmem_budget()
        mt = auto_tl if max_tile_l is None else max_tile_l
        TL = L if L <= mt else max(8, (mt // 8) * 8)

        # Shrink the tile while the per-step working set (double-buffered x/out
        # blocks + weights + intermediates) would overflow the VMEM budget.
        pad = (self.k_max - 1) // 2
        H_pad = self.hidden_padded
        C_in = self.in_features

        def estimate(tl):
            io = 4 * tl * F_total * 4
            weights = (self.k_max * C_in * H_pad * 2 + H_pad * 4
                       + H_pad * C_in * 2 + C_in * 4)
            interm = tl * H_pad * 4 + (tl + 2 * pad) * C_in * 2 * (self.k_max + 2)
            return io + 2 * weights + interm

        while TL > 8 and estimate(TL) > vmem_limit // 2:
            new_tl = max(8, ((TL // 2) // 8) * 8)
            if new_tl == TL:
                break
            TL = new_tl
        return TL, vmem_limit

    def __call__(self, x, max_tile_l=None):
        global _SINGLE_BUFFER_WEIGHTS_OK
        squeezed = (x.ndim == 2)
        if squeezed:
            x = x[None]
        L, F_total = x.shape[1], x.shape[2]
        TL, vmem_limit = self._choose_tiling(L, F_total, max_tile_l)

        modes = ([True, False] if _SINGLE_BUFFER_WEIGHTS_OK is None
                 else [_SINGLE_BUFFER_WEIGHTS_OK])
        out, last_err = None, None
        for single_buf in modes:
            try:
                out = _copeft_forward(
                    x, self.w_fused, self.b_fused, self.w_down_lo, self.down_b,
                    in_features=self.in_features, k_max=self.k_max,
                    tile_l=TL, vmem_limit=vmem_limit,
                    single_buffer_weights=single_buf)
                _SINGLE_BUFFER_WEIGHTS_OK = single_buf
                break
            except Exception as e:        # pl.Buffered(1) unsupported -> retry
                last_err = e
        if out is None:
            raise last_err
        if squeezed:
            out = out[0]
        return out


def _reference(x, block):
    """Pure-JAX reference with lax.conv (PyTorch Conv1d semantics), using the
    same bf16 rounding of activations/weights as the kernel's MXU path."""
    rd = lambda a: a.astype(jnp.bfloat16).astype(jnp.float32)
    squeezed = (x.ndim == 2)
    if squeezed:
        x = x[None]
    C_in = block.in_features
    src = jnp.transpose(rd(x[..., :C_in].astype(jnp.float32)), (0, 2, 1))  # NCL
    outs = []
    for k, w, b in zip(block.kernel_sizes, block.up_w, block.up_b):
        kern = jnp.transpose(rd(w), (2, 1, 0))                 # (O, I, k)
        pl_, pr_ = (k - 1) // 2, (k - 1) - (k - 1) // 2
        o = jax.lax.conv_general_dilated(
            src, kern, (1,), [(pl_, pr_)],
            dimension_numbers=('NCH', 'OIH', 'NCH'),
            precision=jax.lax.Precision.HIGHEST)
        o = o + b[0][None, :, None]
        outs.append(o[:, None])
    co = jnp.concatenate(outs, axis=1)                         # (B, K, O, L)
    if block.aggregation == 'concatenate':
        co = co.reshape(co.shape[0], -1, co.shape[-1])
    elif block.aggregation == 'sum':
        co = co.sum(axis=1)
    else:
        co = co.mean(axis=1)
    co = rd(jax.nn.relu(co))
    dk = rd(block.down_w).T[:, :, None]                        # (C_in, hidden, 1)
    y = jax.lax.conv_general_dilated(
        co, dk, (1,), [(0, 0)], dimension_numbers=('NCH', 'OIH', 'NCH'),
        precision=jax.lax.Precision.HIGHEST)
    y = y + block.down_b[0][None, :, None]
    out = jnp.transpose(y, (0, 2, 1))
    res = x.at[..., :C_in].set(out.astype(x.dtype))
    if squeezed:
        res = res[0]
    return res


if __name__ == "__main__":
    key = jax.random.PRNGKey(0)
    k_x, k_p, k_x2 = jax.random.split(key, 3)

    # --- check 1: concatenate aggregation, two L tiles (exercises the halo
    #              side-arrays and the pass-through sliced store) -------------
    B, L, F_total = 2, 16, 6          # block adapts the first 4 features
    in_features, out_features = 4, 8
    x = jax.random.normal(k_x, (B, L, F_total), jnp.float32)
    blk = COPEFTBlock(in_features, out_features, kernel_sizes=[1, 3, 5],
                      aggregation='concatenate', key=k_p)
    y = jax.block_until_ready(blk(x, max_tile_l=8))      # TL=8 -> 2 tiles/batch
    y_ref = _reference(x, blk)
    assert y.shape == x.shape and y.dtype == x.dtype
    assert jnp.allclose(y, y_ref, atol=1e-2, rtol=1e-2), "mismatch (concatenate)"
    assert jnp.array_equal(y[..., in_features:], x[..., in_features:]), \
        "pass-through features were modified"

    # --- check 2: sum aggregation, single L tile (auto tile size) ------------
    blk_sum = COPEFTBlock(in_features, out_features, kernel_sizes=[1, 3, 5],
                          aggregation='sum', key=k_p)
    y2 = jax.block_until_ready(blk_sum(x))
    y2_ref = _reference(x, blk_sum)
    assert jnp.allclose(y2, y2_ref, atol=2e-2, rtol=2e-2), "mismatch (sum)"
    assert jnp.array_equal(y2[..., in_features:], x[..., in_features:])

    # --- check 3: 2-D input, adapter covers all features, partial last tile --
    L3 = 12
    x3 = jax.random.normal(k_x2, (L3, in_features), jnp.float32)
    y3 = jax.block_until_ready(blk(x3, max_tile_l=8))    # TL=8, last tile partial
    y3_ref = _reference(x3, blk)
    assert y3.shape == x3.shape
    assert jnp.allclose(y3, y3_ref, atol=1e-2, rtol=1e-2), "mismatch (2-D/partial)"

    print("KERNEL_OK")
</pallas_src>

<mosaic_0001>
module attributes {stable_mosaic.version = 11 : i64} {
  func.func @_copeft_kernel(%arg0: i32, %arg1: i32, %arg2: memref<1x8x6xf32, #tpu.memory_space<vmem>>, %arg3: memref<1x1x2x4xbf16, #tpu.memory_space<vmem>>, %arg4: memref<1x1x2x4xbf16, #tpu.memory_space<vmem>>, %arg5: memref<5x4x128xbf16, #tpu.memory_space<vmem>>, %arg6: memref<1x128xf32, #tpu.memory_space<vmem>>, %arg7: memref<128x4xbf16, #tpu.memory_space<vmem>>, %arg8: memref<1x4xf32, #tpu.memory_space<vmem>>, %arg9: memref<1x8x6xf32, #tpu.memory_space<vmem>>) attributes {dimension_semantics = [#tpu.dimension_semantics<parallel>, #tpu.dimension_semantics<parallel>], iteration_bounds = array<i64: 2, 2>, scalar_prefetch = 0 : i64, scratch_operands = 0 : i64, tpu.core_type = #tpu.core_type<tc>, window_params = [{transform_indices = @transform_0, window_bounds = array<i64: 1, 8, 6>}, {transform_indices = @transform_1, window_bounds = array<i64: 1, 1, 2, 4>}, {transform_indices = @transform_2, window_bounds = array<i64: 1, 1, 2, 4>}, {pipeline_mode = #tpu.pipeline_mode<synchronous>, transform_indices = @transform_3, window_bounds = array<i64: 5, 4, 128>}, {pipeline_mode = #tpu.pipeline_mode<synchronous>, transform_indices = @transform_4, window_bounds = array<i64: 1, 128>}, {pipeline_mode = #tpu.pipeline_mode<synchronous>, transform_indices = @transform_5, window_bounds = array<i64: 128, 4>}, {pipeline_mode = #tpu.pipeline_mode<synchronous>, transform_indices = @transform_6, window_bounds = array<i64: 1, 4>}, {transform_indices = @transform_7, window_bounds = array<i64: 1, 8, 6>}]} {
    %c0 = arith.constant 0 : index
    %c0_0 = arith.constant 0 : index
    %c0_1 = arith.constant 0 : index
    %0 = vector.load %arg2[%c0, %c0_0, %c0_1] : memref<1x8x6xf32, #tpu.memory_space<vmem>>, vector<1x8x6xf32>
    %1 = vector.shape_cast %0 : vector<1x8x6xf32> to vector<8x6xf32>
    %2 = vector.extract_strided_slice %1 {offsets = [0, 0], sizes = [8, 4], strides = [1, 1]} : vector<8x6xf32> to vector<8x4xf32>
    %3 = arith.truncf %2 : vector<8x4xf32> to vector<8x4xbf16>
    %c0_2 = arith.constant 0 : index
    %c0_3 = arith.constant 0 : index
    %c0_4 = arith.constant 0 : index
    %c0_5 = arith.constant 0 : index
    %4 = vector.load %arg3[%c0_2, %c0_3, %c0_4, %c0_5] : memref<1x1x2x4xbf16, #tpu.memory_space<vmem>>, vector<1x1x2x4xbf16>
    %5 = vector.shape_cast %4 : vector<1x1x2x4xbf16> to vector<2x4xbf16>
    %c0_6 = arith.constant 0 : index
    %c0_7 = arith.constant 0 : index
    %c0_8 = arith.constant 0 : index
    %c0_9 = arith.constant 0 : index
    %6 = vector.load %arg4[%c0_6, %c0_7, %c0_8, %c0_9] : memref<1x1x2x4xbf16, #tpu.memory_space<vmem>>, vector<1x1x2x4xbf16>
    %7 = vector.shape_cast %6 : vector<1x1x2x4xbf16> to vector<2x4xbf16>
    %8 = tpu.concatenate %5, %3, %7 in 0 : vector<2x4xbf16>, vector<8x4xbf16>, vector<2x4xbf16> -> vector<12x4xbf16>
    %9 = vector.extract_strided_slice %8 {offsets = [0, 0], sizes = [8, 4], strides = [1, 1]} : vector<12x4xbf16> to vector<8x4xbf16>
    %c0_10 = arith.constant 0 : index
    %c0_11 = arith.constant 0 : index
    %c0_12 = arith.constant 0 : index
    %10 = vector.load %arg5[%c0_10, %c0_11, %c0_12] : memref<5x4x128xbf16, #tpu.memory_space<vmem>>, vector<1x4x128xbf16>
    %11 = vector.shape_cast %10 : vector<1x4x128xbf16> to vector<4x128xbf16>
    %cst = arith.constant dense<0.000000e+00> : vector<8x128xf32>
    %12 = tpu.matmul %9, %11, %cst {dimension_numbers = #tpu.dot_dimension_numbers<[1], [0], [0], [1], [0, 0, 1, 1], [], []>} : vector<8x4xbf16>, vector<4x128xbf16>, vector<8x128xf32> -> vector<8x128xf32>
    %13 = vector.extract_strided_slice %8 {offsets = [1, 0], sizes = [8, 4], strides = [1, 1]} : vector<12x4xbf16> to vector<8x4xbf16>
    %c1 = arith.constant 1 : index
    %c0_13 = arith.constant 0 : index
    %c0_14 = arith.constant 0 : index
    %14 = vector.load %arg5[%c1, %c0_13, %c0_14] : memref<5x4x128xbf16, #tpu.memory_space<vmem>>, vector<1x4x128xbf16>
    %15 = vector.shape_cast %14 : vector<1x4x128xbf16> to vector<4x128xbf16>
    %cst_15 = arith.constant dense<0.000000e+00> : vector<8x128xf32>
    %16 = tpu.matmul %13, %15, %cst_15 {dimension_numbers = #tpu.dot_dimension_numbers<[1], [0], [0], [1], [0, 0, 1, 1], [], []>} : vector<8x4xbf16>, vector<4x128xbf16>, vector<8x128xf32> -> vector<8x128xf32>
    %17 = arith.addf %12, %16 : vector<8x128xf32>
    %18 = vector.extract_strided_slice %8 {offsets = [2, 0], sizes = [8, 4], strides = [1, 1]} : vector<12x4xbf16> to vector<8x4xbf16>
    %c2 = arith.constant 2 : index
    %c0_16 = arith.constant 0 : index
    %c0_17 = arith.constant 0 : index
    %19 = vector.load %arg5[%c2, %c0_16, %c0_17] : memref<5x4x128xbf16, #tpu.memory_space<vmem>>, vector<1x4x128xbf16>
    %20 = vector.shape_cast %19 : vector<1x4x128xbf16> to vector<4x128xbf16>
    %cst_18 = arith.constant dense<0.000000e+00> : vector<8x128xf32>
    %21 = tpu.matmul %18, %20, %cst_18 {dimension_numbers = #tpu.dot_dimension_numbers<[1], [0], [0], [1], [0, 0, 1, 1], [], []>} : vector<8x4xbf16>, vector<4x128xbf16>, vector<8x128xf32> -> vector<8x128xf32>
    %22 = arith.addf %17, %21 : vector<8x128xf32>
    %23 = vector.extract_strided_slice %8 {offsets = [3, 0], sizes = [8, 4], strides = [1, 1]} : vector<12x4xbf16> to vector<8x4xbf16>
    %c3 = arith.constant 3 : index
    %c0_19 = arith.constant 0 : index
    %c0_20 = arith.constant 0 : index
    %24 = vector.load %arg5[%c3, %c0_19, %c0_20] : memref<5x4x128xbf16, #tpu.memory_space<vmem>>, vector<1x4x128xbf16>
    %25 = vector.shape_cast %24 : vector<1x4x128xbf16> to vector<4x128xbf16>
    %cst_21 = arith.constant dense<0.000000e+00> : vector<8x128xf32>
    %26 = tpu.matmul %23, %25, %cst_21 {dimension_numbers = #tpu.dot_dimension_numbers<[1], [0], [0], [1], [0, 0, 1, 1], [], []>} : vector<8x4xbf16>, vector<4x128xbf16>, vector<8x128xf32> -> vector<8x128xf32>
    %27 = arith.addf %22, %26 : vector<8x128xf32>
    %28 = vector.extract_strided_slice %8 {offsets = [4, 0], sizes = [8, 4], strides = [1, 1]} : vector<12x4xbf16> to vector<8x4xbf16>
    %c4 = arith.constant 4 : index
    %c0_22 = arith.constant 0 : index
    %c0_23 = arith.constant 0 : index
    %29 = vector.load %arg5[%c4, %c0_22, %c0_23] : memref<5x4x128xbf16, #tpu.memory_space<vmem>>, vector<1x4x128xbf16>
    %30 = vector.shape_cast %29 : vector<1x4x128xbf16> to vector<4x128xbf16>
    %cst_24 = arith.constant dense<0.000000e+00> : vector<8x128xf32>
    %31 = tpu.matmul %28, %30, %cst_24 {dimension_numbers = #tpu.dot_dimension_numbers<[1], [0], [0], [1], [0, 0, 1, 1], [], []>} : vector<8x4xbf16>, vector<4x128xbf16>, vector<8x128xf32> -> vector<8x128xf32>
    %32 = arith.addf %27, %31 : vector<8x128xf32>
    %c0_25 = arith.constant 0 : index
    %c0_26 = arith.constant 0 : index
    %33 = vector.load %arg6[%c0_25, %c0_26] : memref<1x128xf32, #tpu.memory_space<vmem>>, vector<1x128xf32>
    %34 = vector.broadcast %33 : vector<1x128xf32> to vector<8x128xf32>
    %35 = arith.addf %32, %34 : vector<8x128xf32>
    %cst_27 = arith.constant 0.000000e+00 : f32
    %36 = vector.broadcast %cst_27 : f32 to vector<8x128xf32>
    %37 = arith.maximumf %35, %36 : vector<8x128xf32>
    %38 = arith.truncf %37 : vector<8x128xf32> to vector<8x128xbf16>
    %c0_28 = arith.constant 0 : index
    %c0_29 = arith.constant 0 : index
    %39 = vector.load %arg7[%c0_28, %c0_29] : memref<128x4xbf16, #tpu.memory_space<vmem>>, vector<128x4xbf16>
    %cst_30 = arith.constant dense<0.000000e+00> : vector<8x4xf32>
    %40 = tpu.matmul %38, %39, %cst_30 {dimension_numbers = #tpu.dot_dimension_numbers<[1], [0], [0], [1], [0, 0, 1, 1], [], []>} : vector<8x128xbf16>, vector<128x4xbf16>, vector<8x4xf32> -> vector<8x4xf32>
    %c0_31 = arith.constant 0 : index
    %c0_32 = arith.constant 0 : index
    %41 = vector.load %arg8[%c0_31, %c0_32] : memref<1x4xf32, #tpu.memory_space<vmem>>, vector<1x4xf32>
    %42 = vector.broadcast %41 : vector<1x4xf32> to vector<8x4xf32>
    %43 = arith.addf %40, %42 : vector<8x4xf32>
    %c0_33 = arith.constant 0 : index
    %c0_34 = arith.constant 0 : index
    %c0_35 = arith.constant 0 : index
    %44 = vector.load %arg9[%c0_33, %c0_34, %c0_35] : memref<1x8x6xf32, #tpu.memory_space<vmem>>, vector<1x8x4xf32>
    %45 = vector.shape_cast %44 : vector<1x8x4xf32> to vector<8x4xf32>
    %46 = vector.shape_cast %43 : vector<8x4xf32> to vector<1x8x4xf32>
    tpu.vector_store %arg9[%c0_33, %c0_34, %c0_35], %46 {strides = array<i32>} : memref<1x8x6xf32, #tpu.memory_space<vmem>>, vector<1x8x4xf32>,
    %47 = vector.extract_strided_slice %1 {offsets = [0, 4], sizes = [8, 2], strides = [1, 1]} : vector<8x6xf32> to vector<8x2xf32>
    %c0_36 = arith.constant 0 : index
    %c0_37 = arith.constant 0 : index
    %c4_38 = arith.constant 4 : index
    %48 = vector.load %arg9[%c0_36, %c0_37, %c4_38] : memref<1x8x6xf32, #tpu.memory_space<vmem>>, vector<1x8x2xf32>
    %49 = vector.shape_cast %48 : vector<1x8x2xf32> to vector<8x2xf32>
    %50 = vector.shape_cast %47 : vector<8x2xf32> to vector<1x8x2xf32>
    tpu.vector_store %arg9[%c0_36, %c0_37, %c4_38], %50 {strides = array<i32>} : memref<1x8x6xf32, #tpu.memory_space<vmem>>, vector<1x8x2xf32>,
    return
  }
  func.func @transform_0(%arg0: i32, %arg1: i32) -> (i32, i32, i32) {
    %c0_i32 = arith.constant 0 : i32
    %c0_i32_0 = arith.constant 0 : i32
    return %arg0, %arg1, %c0_i32 : i32, i32, i32
  }
  func.func @transform_1(%arg0: i32, %arg1: i32) -> (i32, i32, i32, i32) {
    %c0_i32 = arith.constant 0 : i32
    %c0_i32_0 = arith.constant 0 : i32
    %c0_i32_1 = arith.constant 0 : i32
    return %arg0, %arg1, %c0_i32, %c0_i32_0 : i32, i32, i32, i32
  }
  func.func @transform_2(%arg0: i32, %arg1: i32) -> (i32, i32, i32, i32) {
    %c0_i32 = arith.constant 0 : i32
    %c0_i32_0 = arith.constant 0 : i32
    %c0_i32_1 = arith.constant 0 : i32
    return %arg0, %arg1, %c0_i32, %c0_i32_0 : i32, i32, i32, i32
  }
  func.func @transform_3(%arg0: i32, %arg1: i32) -> (i32, i32, i32) {
    %c0_i32 = arith.constant 0 : i32
    %c0_i32_0 = arith.constant 0 : i32
    %c0_i32_1 = arith.constant 0 : i32
    %c0_i32_2 = arith.constant 0 : i32
    return %c0_i32, %c0_i32_0, %c0_i32_1 : i32, i32, i32
  }
  func.func @transform_4(%arg0: i32, %arg1: i32) -> (i32, i32) {
    %c0_i32 = arith.constant 0 : i32
    %c0_i32_0 = arith.constant 0 : i32
    %c0_i32_1 = arith.constant 0 : i32
    return %c0_i32, %c0_i32_0 : i32, i32
  }
  func.func @transform_5(%arg0: i32, %arg1: i32) -> (i32, i32) {
    %c0_i32 = arith.constant 0 : i32
    %c0_i32_0 = arith.constant 0 : i32
    %c0_i32_1 = arith.constant 0 : i32
    return %c0_i32, %c0_i32_0 : i32, i32
  }
  func.func @transform_6(%arg0: i32, %arg1: i32) -> (i32, i32) {
    %c0_i32 = arith.constant 0 : i32
    %c0_i32_0 = arith.constant 0 : i32
    %c0_i32_1 = arith.constant 0 : i32
    return %c0_i32, %c0_i32_0 : i32, i32
  }
  func.func @transform_7(%arg0: i32, %arg1: i32) -> (i32, i32, i32) {
    %c0_i32 = arith.constant 0 : i32
    %c0_i32_0 = arith.constant 0 : i32
    return %arg0, %arg1, %c0_i32 : i32, i32, i32
  }
}

module attributes {stable_mosaic.version = 11 : i64} {
  func.func @_copeft_kernel(%arg0: i32, %arg1: i32, %arg2: memref<1x8x6xf32, #tpu.memory_space<vmem>>, %arg3: memref<1x1x2x4xbf16, #tpu.memory_space<vmem>>, %arg4: memref<1x1x2x4xbf16, #tpu.memory_space<vmem>>, %arg5: memref<5x4x128xbf16, #tpu.memory_space<vmem>>, %arg6: memref<1x128xf32, #tpu.memory_space<vmem>>, %arg7: memref<128x4xbf16, #tpu.memory_space<vmem>>, %arg8: memref<1x4xf32, #tpu.memory_space<vmem>>, %arg9: memref<1x8x6xf32, #tpu.memory_space<vmem>>) attributes {dimension_semantics = [#tpu.dimension_semantics<parallel>, #tpu.dimension_semantics<parallel>], iteration_bounds = array<i64: 2, 2>, scalar_prefetch = 0 : i64, scratch_operands = 0 : i64, tpu.core_type = #tpu.core_type<tc>, window_params = [{transform_indices = @transform_0, window_bounds = array<i64: 1, 8, 6>}, {transform_indices = @transform_1, window_bounds = array<i64: 1, 1, 2, 4>}, {transform_indices = @transform_2, window_bounds = array<i64: 1, 1, 2, 4>}, {pipeline_mode = #tpu.pipeline_mode<synchronous>, transform_indices = @transform_3, window_bounds = array<i64: 5, 4, 128>}, {pipeline_mode = #tpu.pipeline_mode<synchronous>, transform_indices = @transform_4, window_bounds = array<i64: 1, 128>}, {pipeline_mode = #tpu.pipeline_mode<synchronous>, transform_indices = @transform_5, window_bounds = array<i64: 128, 4>}, {pipeline_mode = #tpu.pipeline_mode<synchronous>, transform_indices = @transform_6, window_bounds = array<i64: 1, 4>}, {transform_indices = @transform_7, window_bounds = array<i64: 1, 8, 6>}]} {
    %c0 = arith.constant 0 : index
    %c0_0 = arith.constant 0 : index
    %c0_1 = arith.constant 0 : index
    %0 = vector.load %arg2[%c0, %c0_0, %c0_1] : memref<1x8x6xf32, #tpu.memory_space<vmem>>, vector<1x8x6xf32>
    %1 = vector.shape_cast %0 : vector<1x8x6xf32> to vector<8x6xf32>
    %2 = vector.extract_strided_slice %1 {offsets = [0, 0], sizes = [8, 4], strides = [1, 1]} : vector<8x6xf32> to vector<8x4xf32>
    %3 = arith.truncf %2 : vector<8x4xf32> to vector<8x4xbf16>
    %c0_2 = arith.constant 0 : index
    %c0_3 = arith.constant 0 : index
    %c0_4 = arith.constant 0 : index
    %c0_5 = arith.constant 0 : index
    %4 = vector.load %arg3[%c0_2, %c0_3, %c0_4, %c0_5] : memref<1x1x2x4xbf16, #tpu.memory_space<vmem>>, vector<1x1x2x4xbf16>
    %5 = vector.shape_cast %4 : vector<1x1x2x4xbf16> to vector<2x4xbf16>
    %c0_6 = arith.constant 0 : index
    %c0_7 = arith.constant 0 : index
    %c0_8 = arith.constant 0 : index
    %c0_9 = arith.constant 0 : index
    %6 = vector.load %arg4[%c0_6, %c0_7, %c0_8, %c0_9] : memref<1x1x2x4xbf16, #tpu.memory_space<vmem>>, vector<1x1x2x4xbf16>
    %7 = vector.shape_cast %6 : vector<1x1x2x4xbf16> to vector<2x4xbf16>
    %8 = tpu.concatenate %5, %3, %7 in 0 : vector<2x4xbf16>, vector<8x4xbf16>, vector<2x4xbf16> -> vector<12x4xbf16>
    %9 = vector.extract_strided_slice %8 {offsets = [0, 0], sizes = [8, 4], strides = [1, 1]} : vector<12x4xbf16> to vector<8x4xbf16>
    %c0_10 = arith.constant 0 : index
    %c0_11 = arith.constant 0 : index
    %c0_12 = arith.constant 0 : index
    %10 = vector.load %arg5[%c0_10, %c0_11, %c0_12] : memref<5x4x128xbf16, #tpu.memory_space<vmem>>, vector<1x4x128xbf16>
    %11 = vector.shape_cast %10 : vector<1x4x128xbf16> to vector<4x128xbf16>
    %cst = arith.constant dense<0.000000e+00> : vector<8x128xf32>
    %12 = tpu.matmul %9, %11, %cst {dimension_numbers = #tpu.dot_dimension_numbers<[1], [0], [0], [1], [0, 0, 1, 1], [], []>} : vector<8x4xbf16>, vector<4x128xbf16>, vector<8x128xf32> -> vector<8x128xf32>
    %13 = vector.extract_strided_slice %8 {offsets = [1, 0], sizes = [8, 4], strides = [1, 1]} : vector<12x4xbf16> to vector<8x4xbf16>
    %c1 = arith.constant 1 : index
    %c0_13 = arith.constant 0 : index
    %c0_14 = arith.constant 0 : index
    %14 = vector.load %arg5[%c1, %c0_13, %c0_14] : memref<5x4x128xbf16, #tpu.memory_space<vmem>>, vector<1x4x128xbf16>
    %15 = vector.shape_cast %14 : vector<1x4x128xbf16> to vector<4x128xbf16>
    %cst_15 = arith.constant dense<0.000000e+00> : vector<8x128xf32>
    %16 = tpu.matmul %13, %15, %cst_15 {dimension_numbers = #tpu.dot_dimension_numbers<[1], [0], [0], [1], [0, 0, 1, 1], [], []>} : vector<8x4xbf16>, vector<4x128xbf16>, vector<8x128xf32> -> vector<8x128xf32>
    %17 = arith.addf %12, %16 : vector<8x128xf32>
    %18 = vector.extract_strided_slice %8 {offsets = [2, 0], sizes = [8, 4], strides = [1, 1]} : vector<12x4xbf16> to vector<8x4xbf16>
    %c2 = arith.constant 2 : index
    %c0_16 = arith.constant 0 : index
    %c0_17 = arith.constant 0 : index
    %19 = vector.load %arg5[%c2, %c0_16, %c0_17] : memref<5x4x128xbf16, #tpu.memory_space<vmem>>, vector<1x4x128xbf16>
    %20 = vector.shape_cast %19 : vector<1x4x128xbf16> to vector<4x128xbf16>
    %cst_18 = arith.constant dense<0.000000e+00> : vector<8x128xf32>
    %21 = tpu.matmul %18, %20, %cst_18 {dimension_numbers = #tpu.dot_dimension_numbers<[1], [0], [0], [1], [0, 0, 1, 1], [], []>} : vector<8x4xbf16>, vector<4x128xbf16>, vector<8x128xf32> -> vector<8x128xf32>
    %22 = arith.addf %17, %21 : vector<8x128xf32>
    %23 = vector.extract_strided_slice %8 {offsets = [3, 0], sizes = [8, 4], strides = [1, 1]} : vector<12x4xbf16> to vector<8x4xbf16>
    %c3 = arith.constant 3 : index
    %c0_19 = arith.constant 0 : index
    %c0_20 = arith.constant 0 : index
    %24 = vector.load %arg5[%c3, %c0_19, %c0_20] : memref<5x4x128xbf16, #tpu.memory_space<vmem>>, vector<1x4x128xbf16>
    %25 = vector.shape_cast %24 : vector<1x4x128xbf16> to vector<4x128xbf16>
    %cst_21 = arith.constant dense<0.000000e+00> : vector<8x128xf32>
    %26 = tpu.matmul %23, %25, %cst_21 {dimension_numbers = #tpu.dot_dimension_numbers<[1], [0], [0], [1], [0, 0, 1, 1], [], []>} : vector<8x4xbf16>, vector<4x128xbf16>, vector<8x128xf32> -> vector<8x128xf32>
    %27 = arith.addf %22, %26 : vector<8x128xf32>
    %28 = vector.extract_strided_slice %8 {offsets = [4, 0], sizes = [8, 4], strides = [1, 1]} : vector<12x4xbf16> to vector<8x4xbf16>
    %c4 = arith.constant 4 : index
    %c0_22 = arith.constant 0 : index
    %c0_23 = arith.constant 0 : index
    %29 = vector.load %arg5[%c4, %c0_22, %c0_23] : memref<5x4x128xbf16, #tpu.memory_space<vmem>>, vector<1x4x128xbf16>
    %30 = vector.shape_cast %29 : vector<1x4x128xbf16> to vector<4x128xbf16>
    %cst_24 = arith.constant dense<0.000000e+00> : vector<8x128xf32>
    %31 = tpu.matmul %28, %30, %cst_24 {dimension_numbers = #tpu.dot_dimension_numbers<[1], [0], [0], [1], [0, 0, 1, 1], [], []>} : vector<8x4xbf16>, vector<4x128xbf16>, vector<8x128xf32> -> vector<8x128xf32>
    %32 = arith.addf %27, %31 : vector<8x128xf32>
    %c0_25 = arith.constant 0 : index
    %c0_26 = arith.constant 0 : index
    %33 = vector.load %arg6[%c0_25, %c0_26] : memref<1x128xf32, #tpu.memory_space<vmem>>, vector<1x128xf32>
    %34 = vector.broadcast %33 : vector<1x128xf32> to vector<8x128xf32>
    %35 = arith.addf %32, %34 : vector<8x128xf32>
    %cst_27 = arith.constant 0.000000e+00 : f32
    %36 = vector.broadcast %cst_27 : f32 to vector<8x128xf32>
    %37 = arith.maximumf %35, %36 : vector<8x128xf32>
    %38 = arith.truncf %37 : vector<8x128xf32> to vector<8x128xbf16>
    %c0_28 = arith.constant 0 : index
    %c0_29 = arith.constant 0 : index
    %39 = vector.load %arg7[%c0_28, %c0_29] : memref<128x4xbf16, #tpu.memory_space<vmem>>, vector<128x4xbf16>
    %cst_30 = arith.constant dense<0.000000e+00> : vector<8x4xf32>
    %40 = tpu.matmul %38, %39, %cst_30 {dimension_numbers = #tpu.dot_dimension_numbers<[1], [0], [0], [1], [0, 0, 1, 1], [], []>} : vector<8x128xbf16>, vector<128x4xbf16>, vector<8x4xf32> -> vector<8x4xf32>
    %c0_31 = arith.constant 0 : index
    %c0_32 = arith.constant 0 : index
    %41 = vector.load %arg8[%c0_31, %c0_32] : memref<1x4xf32, #tpu.memory_space<vmem>>, vector<1x4xf32>
    %42 = vector.broadcast %41 : vector<1x4xf32> to vector<8x4xf32>
    %43 = arith.addf %40, %42 : vector<8x4xf32>
    %c0_33 = arith.constant 0 : index
    %c0_34 = arith.constant 0 : index
    %c0_35 = arith.constant 0 : index
    %44 = vector.load %arg9[%c0_33, %c0_34, %c0_35] : memref<1x8x6xf32, #tpu.memory_space<vmem>>, vector<1x8x4xf32>
    %45 = vector.shape_cast %44 : vector<1x8x4xf32> to vector<8x4xf32>
    %46 = vector.shape_cast %43 : vector<8x4xf32> to vector<1x8x4xf32>
    tpu.vector_store %arg9[%c0_33, %c0_34, %c0_35], %46 {strides = array<i32>} : memref<1x8x6xf32, #tpu.memory_space<vmem>>, vector<1x8x4xf32>,
    %47 = vector.extract_strided_slice %1 {offsets = [0, 4], sizes = [8, 2], strides = [1, 1]} : vector<8x6xf32> to vector<8x2xf32>
    %c0_36 = arith.constant 0 : index
    %c0_37 = arith.constant 0 : index
    %c4_38 = arith.constant 4 : index
    %48 = vector.load %arg9[%c0_36, %c0_37, %c4_38] : memref<1x8x6xf32, #tpu.memory_space<vmem>>, vector<1x8x2xf32>
    %49 = vector.shape_cast %48 : vector<1x8x2xf32> to vector<8x2xf32>
    %50 = vector.shape_cast %47 : vector<8x2xf32> to vector<1x8x2xf32>
    tpu.vector_store %arg9[%c0_36, %c0_37, %c4_38], %50 {strides = array<i32>} : memref<1x8x6xf32, #tpu.memory_space<vmem>>, vector<1x8x2xf32>,
    return
  }
  func.func @transform_0(%arg0: i32, %arg1: i32) -> (i32, i32, i32) {
    %c0_i32 = arith.constant 0 : i32
    %c0_i32_0 = arith.constant 0 : i32
    return %arg0, %arg1, %c0_i32 : i32, i32, i32
  }
  func.func @transform_1(%arg0: i32, %arg1: i32) -> (i32, i32, i32, i32) {
    %c0_i32 = arith.constant 0 : i32
    %c0_i32_0 = arith.constant 0 : i32
    %c0_i32_1 = arith.constant 0 : i32
    return %arg0, %arg1, %c0_i32, %c0_i32_0 : i32, i32, i32, i32
  }
  func.func @transform_2(%arg0: i32, %arg1: i32) -> (i32, i32, i32, i32) {
    %c0_i32 = arith.constant 0 : i32
    %c0_i32_0 = arith.constant 0 : i32
    %c0_i32_1 = arith.constant 0 : i32
    return %arg0, %arg1, %c0_i32, %c0_i32_0 : i32, i32, i32, i32
  }
  func.func @transform_3(%arg0: i32, %arg1: i32) -> (i32, i32, i32) {
    %c0_i32 = arith.constant 0 : i32
    %c0_i32_0 = arith.constant 0 : i32
    %c0_i32_1 = arith.constant 0 : i32
    %c0_i32_2 = arith.constant 0 : i32
    return %c0_i32, %c0_i32_0, %c0_i32_1 : i32, i32, i32
  }
  func.func @transform_4(%arg0: i32, %arg1: i32) -> (i32, i32) {
    %c0_i32 = arith.constant 0 : i32
    %c0_i32_0 = arith.constant 0 : i32
    %c0_i32_1 = arith.constant 0 : i32
    return %c0_i32, %c0_i32_0 : i32, i32
  }
  func.func @transform_5(%arg0: i32, %arg1: i32) -> (i32, i32) {
    %c0_i32 = arith.constant 0 : i32
    %c0_i32_0 = arith.constant 0 : i32
    %c0_i32_1 = arith.constant 0 : i32
    return %c0_i32, %c0_i32_0 : i32, i32
  }
  func.func @transform_6(%arg0: i32, %arg1: i32) -> (i32, i32) {
    %c0_i32 = arith.constant 0 : i32
    %c0_i32_0 = arith.constant 0 : i32
    %c0_i32_1 = arith.constant 0 : i32
    return %c0_i32, %c0_i32_0 : i32, i32
  }
  func.func @transform_7(%arg0: i32, %arg1: i32) -> (i32, i32, i32) {
    %c0_i32 = arith.constant 0 : i32
    %c0_i32_0 = arith.constant 0 : i32
    return %arg0, %arg1, %c0_i32 : i32, i32, i32
  }
}

</mosaic_0001>

<llo_original>
// kernel: _copeft_forward.1
$region0: #{_copeft_forward.1}
  #allocation0 [shape = 'u32[]', space=smem, size = 0x4, offset = 0x4, fixed_abs, tag = 'smem constant byte address 0x4 - core index']
  #allocation1 [shape = 'u32[144,128]{1,0:T(1,128)}', space=vmem, size = 0x12000, scoped, tag = 'internal scratch']
  %s0 = inlined_call_operand.vmem [shape: f32[2,16,6], index: 0, kind: input, shape index: {}]
  %s1 = inlined_call_operand.vmem [shape: bf16[2,2,2,4], index: 1, kind: input, shape index: {}]
  %s2 = inlined_call_operand.vmem [shape: bf16[2,2,2,4], index: 2, kind: input, shape index: {}]
  %s3 = inlined_call_operand.vmem [shape: bf16[5,4,128], index: 3, kind: input, shape index: {}]
  %s4 = inlined_call_operand.vmem [shape: f32[1,128], index: 4, kind: input, shape index: {}]
  %s5 = inlined_call_operand.vmem [shape: bf16[128,4], index: 5, kind: input, shape index: {}]
  %s6 = inlined_call_operand.vmem [shape: f32[1,4], index: 6, kind: input, shape index: {}]
  %s7 = inlined_call_operand.vmem [shape: f32[2,16,6], index: 7, kind: output, shape index: {}]
  %s8 = sld [smem:[#allocation0]]
  $region61: #{_copeft_forward.1} parent=0
    _
  %s10 = ssub.s32 1, %s8
  %s11 = scalar_select 0, %s10, %s8
  loop: start=0, step=1, limit=6
  $region2: #{_copeft_forward.1} parent=0 // loop_pre_header
    _
  $region3: #{_copeft_forward.1} parent=0 // loop_header
    %s13 = sphi 0, %s17
    %p14 = scmp.ge.s32.totalorder %s13, 6
    %s20 = sphi 0, %s32
    %s21 = sphi 0, %s28
    %s22 = sphi 0, %s20
    %s23 = sphi 0, %s21
    %s24 = sphi 0, %s22
    %s25 = sphi 0, %s23
    %s37 = sphi 0, %s39
    %s40 = sphi 0, %s37
    %s41 = sphi 0, %s40
    %s57 = sphi 0, %s41
    %s65 = sphi 0, %s67
    %s68 = sphi 0, %s65
    %s69 = sphi 0, %s68
    %s85 = sphi 0, %s69
    %s93 = sphi 0, %s95
    %s96 = sphi 0, %s93
    %s97 = sphi 0, %s96
    %s113 = sphi 0, %s97
    %s117 = sphi 0, %s117
    %s119 = sphi 0, %s117
    %s120 = sphi 0, %s119
    %s134 = sphi 0, %s120
    %s138 = sphi 0, %s138
    %s140 = sphi 0, %s138
    %s141 = sphi 0, %s140
    %s155 = sphi 0, %s141
    %s159 = sphi 0, %s159
    %s161 = sphi 0, %s159
    %s162 = sphi 0, %s161
    %s176 = sphi 0, %s162
    %s180 = sphi 0, %s180
    %s182 = sphi 0, %s180
    %s183 = sphi 0, %s182
    %s197 = sphi 0, %s183
    %s205 = sphi 0, %s207
    %s208 = sphi 0, %s205
    %s209 = sphi 0, %s208
    %s225 = sphi 0, %s209
  $region4: #{_copeft_forward.1} parent=0 // loop_header_branch
    %16 = sbr.rel (%p14) target = $region8
  $region5: #{_copeft_forward.1} parent=0 // loop_body
    %s18 = ssub.s32 %s13, 1
    %s19 = ssub.s32 %s13, 2
    %s26 = sadd.s32 1, %s21
    %p27 = scmp.ge.s32.totalorder %s26, 2
    %s28 = scalar_select %p27, 0, %s26
    %s29 = sadd.s32 1, %s20
    %s30 = scalar_select %p27, %s29, %s20
    %p31 = scmp.ge.s32.totalorder %s30, 2
    %s32 = scalar_select %p31, 0, %s30
    %s33 = ssub.s32 %s20, %s32
    %s34 = ssub.s32 %s21, %s28
    %s35 = sor.u32 %s33, %s34
    %p36 = scmp.eq.s32.totalorder %s35, 0
    %s38 = sadd.s32 %s37, 1
    %s39 = scalar_select %p36, %s37, %s38
    %p42 = pneg %p36
    %p43 = scmp.eq.s32.totalorder %s13, 3
    %p44 = por %p42, %p43
    %p45 = scmp.ne.s32.totalorder %s37, %s40
    %p46 = scmp.eq.s32.totalorder %s13, 0
    %p47 = por %p45, %p46
    %p48 = scmp.ne.s32.totalorder %s37, %s40
    %p49 = scmp.eq.s32.totalorder %s18, 3
    %p50 = por %p48, %p49
    %p51 = scmp.ne.s32.totalorder %s40, %s41
    %p52 = scmp.eq.s32.totalorder %s18, 0
    %p53 = por %p51, %p52
    %p54 = scmp.ne.s32.totalorder %s40, %s41
    %p55 = scmp.eq.s32.totalorder %s19, 3
    %p56 = por %p54, %p55
    %p58 = scmp.ne.s32.totalorder %s41, %s57
    %p59 = scmp.eq.s32.totalorder %s19, 0
    %p60 = por %p58, %p59
    %s61 = ssub.s32 %s20, %s32
    %s62 = ssub.s32 %s21, %s28
    %s63 = sor.u32 %s61, %s62
    %p64 = scmp.eq.s32.totalorder %s63, 0
    %s66 = sadd.s32 %s65, 1
    %s67 = scalar_select %p64, %s65, %s66
    %p70 = pneg %p64
    %p71 = scmp.eq.s32.totalorder %s13, 3
    %p72 = por %p70, %p71
    %p73 = scmp.ne.s32.totalorder %s65, %s68
    %p74 = scmp.eq.s32.totalorder %s13, 0
    %p75 = por %p73, %p74
    %p76 = scmp.ne.s32.totalorder %s65, %s68
    %p77 = scmp.eq.s32.totalorder %s18, 3
    %p78 = por %p76, %p77
    %p79 = scmp.ne.s32.totalorder %s68, %s69
    %p80 = scmp.eq.s32.totalorder %s18, 0
    %p81 = por %p79, %p80
    %p82 = scmp.ne.s32.totalorder %s68, %s69
    %p83 = scmp.eq.s32.totalorder %s19, 3
    %p84 = por %p82, %p83
    %p86 = scmp.ne.s32.totalorder %s69, %s85
    %p87 = scmp.eq.s32.totalorder %s19, 0
    %p88 = por %p86, %p87
    %s89 = ssub.s32 %s20, %s32
    %s90 = ssub.s32 %s21, %s28
    %s91 = sor.u32 %s89, %s90
    %p92 = scmp.eq.s32.totalorder %s91, 0
    %s94 = sadd.s32 %s93, 1
    %s95 = scalar_select %p92, %s93, %s94
    %p98 = pneg %p92
    %p99 = scmp.eq.s32.totalorder %s13, 3
    %p100 = por %p98, %p99
    %p101 = scmp.ne.s32.totalorder %s93, %s96
    %p102 = scmp.eq.s32.totalorder %s13, 0
    %p103 = por %p101, %p102
    %p104 = scmp.ne.s32.totalorder %s93, %s96
    %p105 = scmp.eq.s32.totalorder %s18, 3
    %p106 = por %p104, %p105
    %p107 = scmp.ne.s32.totalorder %s96, %s97
    %p108 = scmp.eq.s32.totalorder %s18, 0
    %p109 = por %p107, %p108
    %p110 = scmp.ne.s32.totalorder %s96, %s97
    %p111 = scmp.eq.s32.totalorder %s19, 3
    %p112 = por %p110, %p111
    %p114 = scmp.ne.s32.totalorder %s97, %s113
    %p115 = scmp.eq.s32.totalorder %s19, 0
    %p116 = por %p114, %p115
    %s118 = sadd.s32 %s117, 1
    %p121 = scmp.eq.s32.totalorder %s13, 3
    %p122 = scmp.ne.s32.totalorder %s117, %s119
    %p123 = scmp.eq.s32.totalorder %s13, 0
    %p124 = por %p122, %p123
    %p125 = scmp.ne.s32.totalorder %s117, %s119
    %p126 = scmp.eq.s32.totalorder %s18, 3
    %p127 = por %p125, %p126
    %p128 = scmp.ne.s32.totalorder %s119, %s120
    %p129 = scmp.eq.s32.totalorder %s18, 0
    %p130 = por %p128, %p129
    %p131 = scmp.ne.s32.totalorder %s119, %s120
    %p132 = scmp.eq.s32.totalorder %s19, 3
    %p133 = por %p131, %p132
    %p135 = scmp.ne.s32.totalorder %s120, %s134
    %p136 = scmp.eq.s32.totalorder %s19, 0
    %p137 = por %p135, %p136
    %s139 = sadd.s32 %s138, 1
    %p142 = scmp.eq.s32.totalorder %s13, 3
    %p143 = scmp.ne.s32.totalorder %s138, %s140
    %p144 = scmp.eq.s32.totalorder %s13, 0
    %p145 = por %p143, %p144
    %p146 = scmp.ne.s32.totalorder %s138, %s140
    %p147 = scmp.eq.s32.totalorder %s18, 3
    %p148 = por %p146, %p147
    %p149 = scmp.ne.s32.totalorder %s140, %s141
    %p150 = scmp.eq.s32.totalorder %s18, 0
    %p151 = por %p149, %p150
    %p152 = scmp.ne.s32.totalorder %s140, %s141
    %p153 = scmp.eq.s32.totalorder %s19, 3
    %p154 = por %p152, %p153
    %p156 = scmp.ne.s32.totalorder %s141, %s155
    %p157 = scmp.eq.s32.totalorder %s19, 0
    %p158 = por %p156, %p157
    %s160 = sadd.s32 %s159, 1
    %p163 = scmp.eq.s32.totalorder %s13, 3
    %p164 = scmp.ne.s32.totalorder %s159, %s161
    %p165 = scmp.eq.s32.totalorder %s13, 0
    %p166 = por %p164, %p165
    %p167 = scmp.ne.s32.totalorder %s159, %s161
    %p168 = scmp.eq.s32.totalorder %s18, 3
    %p169 = por %p167, %p168
    %p170 = scmp.ne.s32.totalorder %s161, %s162
    %p171 = scmp.eq.s32.totalorder %s18, 0
    %p172 = por %p170, %p171
    %p173 = scmp.ne.s32.totalorder %s161, %s162
    %p174 = scmp.eq.s32.totalorder %s19, 3
    %p175 = por %p173, %p174
    %p177 = scmp.ne.s32.totalorder %s162, %s176
    %p178 = scmp.eq.s32.totalorder %s19, 0
    %p179 = por %p177, %p178
    %s181 = sadd.s32 %s180, 1
    %p184 = scmp.eq.s32.totalorder %s13, 3
    %p185 = scmp.ne.s32.totalorder %s180, %s182
    %p186 = scmp.eq.s32.totalorder %s13, 0
    %p187 = por %p185, %p186
    %p188 = scmp.ne.s32.totalorder %s180, %s182
    %p189 = scmp.eq.s32.totalorder %s18, 3
    %p190 = por %p188, %p189
    %p191 = scmp.ne.s32.totalorder %s182, %s183
    %p192 = scmp.eq.s32.totalorder %s18, 0
    %p193 = por %p191, %p192
    %p194 = scmp.ne.s32.totalorder %s182, %s183
    %p195 = scmp.eq.s32.totalorder %s19, 3
    %p196 = por %p194, %p195
    %p198 = scmp.ne.s32.totalorder %s183, %s197
    %p199 = scmp.eq.s32.totalorder %s19, 0
    %p200 = por %p198, %p199
    %s201 = ssub.s32 %s20, %s32
    %s202 = ssub.s32 %s21, %s28
    %s203 = sor.u32 %s201, %s202
    %p204 = scmp.eq.s32.totalorder %s203, 0
    %s206 = sadd.s32 %s205, 1
    %s207 = scalar_select %p204, %s205, %s206
    %p210 = pneg %p204
    %p211 = scmp.eq.s32.totalorder %s13, 3
    %p212 = por %p210, %p211
    %p213 = scmp.ne.s32.totalorder %s205, %s208
    %p214 = scmp.eq.s32.totalorder %s13, 0
    %p215 = por %p213, %p214
    %p216 = scmp.ne.s32.totalorder %s205, %s208
    %p217 = scmp.eq.s32.totalorder %s18, 3
    %p218 = por %p216, %p217
    %p219 = scmp.ne.s32.totalorder %s208, %s209
    %p220 = scmp.eq.s32.totalorder %s18, 0
    %p221 = por %p219, %p220
    %p222 = scmp.ne.s32.totalorder %s208, %s209
    %p223 = scmp.eq.s32.totalorder %s19, 3
    %p224 = por %p222, %p223
    %p226 = scmp.ne.s32.totalorder %s209, %s225
    %p227 = scmp.eq.s32.totalorder %s19, 0
    %p228 = por %p226, %p227
    %p229 = scmp.le.s32.totalorder 1, %s13
    %p230 = scmp.lt.s32.totalorder %s13, 5
    %p231 = pnand %p229, %p230
    %p232 = pneg %p231
    // Predicated region
    $region9: #{_copeft_forward.1} parent=5 // pred_check
      _
    $region10: #{_copeft_forward.1} parent=5 // pred_check_branch
      %234 = sbr.rel (%p231) target = $region12
    $region11: #{_copeft_forward.1} parent=5 // pred_region
      %s235 = ssub.s32 %s13, 1
      // Predicated region
      $region13: #{_copeft_forward.1} parent=11 // pred_check
        %p236 = pneg %p130
      $region14: #{_copeft_forward.1} parent=11 // pred_check_branch
        %238 = sbr.rel (%p236) target = $region16
      $region15: #{_copeft_forward.1} parent=11 // pred_region
        _
      $region16: #{_copeft_forward.1} parent=11 // pred_fallthru
        _
      // Predicated region
      $region17: #{_copeft_forward.1} parent=11 // pred_check
        %p239 = pneg %p151
      $region18: #{_copeft_forward.1} parent=11 // pred_check_branch
        %241 = sbr.rel (%p239) target = $region20
      $region19: #{_copeft_forward.1} parent=11 // pred_region
        _
      $region20: #{_copeft_forward.1} parent=11 // pred_fallthru
        _
      // Predicated region
      $region21: #{_copeft_forward.1} parent=11 // pred_check
        %p242 = pneg %p172
      $region22: #{_copeft_forward.1} parent=11 // pred_check_branch
        %244 = sbr.rel (%p242) target = $region24
      $region23: #{_copeft_forward.1} parent=11 // pred_region
        _
      $region24: #{_copeft_forward.1} parent=11 // pred_fallthru
        _
      // Predicated region
      $region25: #{_copeft_forward.1} parent=11 // pred_check
        %p245 = pneg %p193
      $region26: #{_copeft_forward.1} parent=11 // pred_check_branch
        %247 = sbr.rel (%p245) target = $region28
      $region27: #{_copeft_forward.1} parent=11 // pred_region
        _
      $region28: #{_copeft_forward.1} parent=11 // pred_fallthru
        _
    $region12: #{_copeft_forward.1} parent=5 // pred_fallthru
      _
    %p248 = scmp.lt.s32.totalorder %s13, 4
    // Predicated region
    $region29: #{_copeft_forward.1} parent=5 // pred_check
      %p249 = pneg %p248
    $region30: #{_copeft_forward.1} parent=5 // pred_check_branch
      %251 = sbr.rel (%p249) target = $region32
    $region31: #{_copeft_forward.1} parent=5 // pred_region
      // Predicated region
      $region33: #{_copeft_forward.1} parent=31 // pred_check
        %p252 = pneg %p47
      $region34: #{_copeft_forward.1} parent=31 // pred_check_branch
        %254 = sbr.rel (%p252) target = $region36
      $region35: #{_copeft_forward.1} parent=31 // pred_region
        %p255 = scmp.lt.s32.totalorder %s20, 1
        %s256 = scalar_select %p255, %s20, 1
        %p257 = scmp.lt.s32.totalorder %s21, 1
        %s258 = scalar_select %p257, %s21, 1
        %s259 = smul.addr %s256, 2
        %s260 = sadd.s32 %s258, %s259
        %s261 = smul.addr %s260, 8
        %s262 = scalar_lea.vmem %s0, %s261
      $region36: #{_copeft_forward.1} parent=31 // pred_fallthru
        _
      // Predicated region
      $region37: #{_copeft_forward.1} parent=31 // pred_check
        %p263 = pneg %p75
      $region38: #{_copeft_forward.1} parent=31 // pred_check_branch
        %265 = sbr.rel (%p263) target = $region40
      $region39: #{_copeft_forward.1} parent=31 // pred_region
        %p266 = scmp.lt.s32.totalorder %s20, 1
        %s267 = scalar_select %p266, %s20, 1
        %p268 = scmp.lt.s32.totalorder %s21, 1
        %s269 = scalar_select %p268, %s21, 1
        %s270 = smul.addr %s267, 2
        %s271 = sadd.s32 %s269, %s270
        %s272 = scalar_lea.vmem %s1, %s271
      $region40: #{_copeft_forward.1} parent=31 // pred_fallthru
        _
      // Predicated region
      $region41: #{_copeft_forward.1} parent=31 // pred_check
        %p273 = pneg %p103
      $region42: #{_copeft_forward.1} parent=31 // pred_check_branch
        %275 = sbr.rel (%p273) target = $region44
      $region43: #{_copeft_forward.1} parent=31 // pred_region
        %p276 = scmp.lt.s32.totalorder %s20, 1
        %s277 = scalar_select %p276, %s20, 1
        %p278 = scmp.lt.s32.totalorder %s21, 1
        %s279 = scalar_select %p278, %s21, 1
        %s280 = smul.addr %s277, 2
        %s281 = sadd.s32 %s279, %s280
        %s282 = scalar_lea.vmem %s2, %s281
      $region44: #{_copeft_forward.1} parent=31 // pred_fallthru
        _
    $region32: #{_copeft_forward.1} parent=5 // pred_fallthru
      _
    %p283 = scmp.le.s32.totalorder 1, %s13
    %p284 = scmp.lt.s32.totalorder %s13, 5
    %p285 = pnand %p283, %p284
    %p286 = pneg %p285
    // Predicated region
    $region45: #{_copeft_forward.1} parent=5 // pred_check
      _
    $region46: #{_copeft_forward.1} parent=5 // pred_check_branch
      %288 = sbr.rel (%p285) target = $region48
    $region47: #{_copeft_forward.1} parent=5 // pred_region
      %s289 = ssub.s32 %s13, 1
      %p290 = scmp.lt.s32.totalorder %s22, 1
      %s291 = scalar_select %p290, %s22, 1
      %p292 = scmp.lt.s32.totalorder %s23, 1
      %s293 = scalar_select %p292, %s23, 1
      %s294 = smul.addr %s291, 2
      %s295 = sadd.s32 %s293, %s294
      %s296 = smul.addr %s295, 8
      %s297 = scalar_lea.vmem %s0, %s296
      %p298 = pneg %p53
      %p299 = pneg %p50
      %p300 = scmp.lt.s32.totalorder %s22, 1
      %s301 = scalar_select %p300, %s22, 1
      %p302 = scmp.lt.s32.totalorder %s23, 1
      %s303 = scalar_select %p302, %s23, 1
      %s304 = smul.addr %s301, 2
      %s305 = sadd.s32 %s303, %s304
      %s306 = scalar_lea.vmem %s1, %s305
      %p307 = pneg %p81
      %p308 = pneg %p78
      %p309 = scmp.lt.s32.totalorder %s22, 1
      %s310 = scalar_select %p309, %s22, 1
      %p311 = scmp.lt.s32.totalorder %s23, 1
      %s312 = scalar_select %p311, %s23, 1
      %s313 = smul.addr %s310, 2
      %s314 = sadd.s32 %s312, %s313
      %s315 = scalar_lea.vmem %s2, %s314
      %p316 = pneg %p109
      %p317 = pneg %p106
      %p318 = pneg %p130
      %p319 = pneg %p127
      %p320 = pneg %p151
      %p321 = pneg %p148
      %p322 = pneg %p172
      %p323 = pneg %p169
      %p324 = pneg %p193
      %p325 = pneg %p190
      %p326 = pneg %p221
      %p327 = pneg %p218
      %p328 = scmp.lt.s32.totalorder %s22, 1
      %s329 = scalar_select %p328, %s22, 1
      %p330 = scmp.lt.s32.totalorder %s23, 1
      %s331 = scalar_select %p330, %s23, 1
      %s332 = smul.addr %s329, 2
      %s333 = sadd.s32 %s331, %s332
      %s334 = smul.addr %s333, 8
      %s335 = scalar_lea.vmem %s7, %s334
      %p336 = scmp.lt.s32.totalorder %s22, 1
      %s337 = scalar_select %p336, %s22, 1
      %p338 = scmp.lt.s32.totalorder %s23, 1
      %s339 = scalar_select %p338, %s23, 1
      %s340 = smul.addr %s337, 2
      %s341 = sadd.s32 %s339, %s340
      %s342 = smul.addr %s341, 8
      %s343 = scalar_lea.vmem %s0, %s342
      %p344 = scmp.lt.s32.totalorder %s22, 1
      %s345 = scalar_select %p344, %s22, 1
      %p346 = scmp.lt.s32.totalorder %s23, 1
      %s347 = scalar_select %p346, %s23, 1
      %s348 = smul.addr %s345, 2
      %s349 = sadd.s32 %s347, %s348
      %s350 = scalar_lea.vmem %s1, %s349
      %p351 = scmp.lt.s32.totalorder %s22, 1
      %s352 = scalar_select %p351, %s22, 1
      %p353 = scmp.lt.s32.totalorder %s23, 1
      %s354 = scalar_select %p353, %s23, 1
      %s355 = smul.addr %s352, 2
      %s356 = sadd.s32 %s354, %s355
      %s357 = scalar_lea.vmem %s2, %s356
      %p358 = scmp.lt.s32.totalorder %s22, 1
      %s359 = scalar_select %p358, %s22, 1
      %p360 = scmp.lt.s32.totalorder %s23, 1
      %s361 = scalar_select %p360, %s23, 1
      %s362 = smul.addr %s359, 2
      %s363 = sadd.s32 %s361, %s362
      %s364 = smul.addr %s363, 8
      %s365 = scalar_lea.vmem %s7, %s364
      %v367 = vld [vmem:[%s343] sm:$0xff]
      %v368 = vpack.c.bf16 %v367, %v367
      %v369 = vld [vmem:[%s350] sm:$0x1]
      %v370 = vld [vmem:[%s357] sm:$0x1]
      %v372 = vrot.slane %v368, 7
      %v374 = vcombine.low %v370, %v370
      %v376 = vunpack.c.l.s4 1966171168
      %v377 = vunpack.c.0.s8 %v376
      %v378 = vlaneseq
      %v379 = vshrl.u32 %v378, 7
      %v380 = vsub.s32 %v377, %v379
      %v381 = vrot.slane %v374, %v380
      %v383 = vunpack.c.l.s4 1966171168
      %v384 = vunpack.c.0.s8 %v383
      %v385 = vlaneseq
      %v386 = vshrl.u32 %v385, 7
      %v387 = vsub.s32 %v384, %v386
      %v388 = vrot.slane %v381, %v387
      %v389 = vcombine.low %v388, %v388
      %vm390 = vcmask 1040384
      %v393 = vsel %vm390, %v369, %v372
      %vm394 = vcmask 1044480
      %v396 = vsel %vm394, %v393, %v389
      %v397 = vld [vmem:[%s3] sm:$0x3]
      %s398 = scalar_lea.vmem %s3, 2
      %v399 = vld [vmem:[%s398] sm:$0x3]
      %v400 = vshrl.u32 %v396, 16
      %v402 = vshll.u32 %v396, 16
      %v404 = vrot.slane %v402, 1
      %v405 = vor.u32 %v400, %v404
      %vm406 = vcmask 31744
      %v408 = vsel %vm406, %v405, 0
      %vm410 = vcmask 1041408
      %v412 = vsel %vm410, %v399, 0
      %414 = vmatprep.subr.bf16.mxu0 0
      %415 = vmatpush1.bf16.msra.mxu0 %v412
      %416 = vmatprep.subr.bf16.mxu0 0
      %417 = vmatpush1.bf16.msra.mxu0 0
      %418 = vmatprep.subr.bf16.mxu0 0
      %419 = vmatpush1.bf16.msra.mxu0 0
      %420 = vmatprep.subr.bf16.mxu0 0
      %421 = vmatpush1.bf16.msra.mxu0 0
      %422 = vmatprep.subr.bf16.mxu0 0
      %423 = vmatpush1.bf16.msra.mxu0 0
      %424 = vmatprep.subr.bf16.mxu0 0
      %425 = vmatpush1.bf16.msra.mxu0 0
      %426 = vmatprep.subr.bf16.mxu0 0
      %427 = vmatpush1.bf16.msra.mxu0 0
      %428 = vmatprep.subr.bf16.mxu0 0
      %429 = vmatpush1.bf16.msra.mxu0 0
      %430 = vmatprep.subr.bf16.mxu0 0
      %431 = vmatpush1.bf16.msra.mxu0 0
      %432 = vmatprep.subr.bf16.mxu0 0
      %433 = vmatpush1.bf16.msra.mxu0 0
      %434 = vmatprep.subr.bf16.mxu0 0
      %435 = vmatpush1.bf16.msra.mxu0 0
      %436 = vmatprep.subr.bf16.mxu0 0
      %437 = vmatpush1.bf16.msra.mxu0 0
      %438 = vmatprep.subr.bf16.mxu0 0
      %439 = vmatpush1.bf16.msra.mxu0 0
      %440 = vmatprep.subr.bf16.mxu0 0
      %441 = vmatpush1.bf16.msra.mxu0 0
      %442 = vmatprep.subr.bf16.mxu0 0
      %443 = vmatpush1.bf16.msra.mxu0 0
      %444 = vmatprep.subr.bf16.mxu0 0
      %445 = vmatpush1.bf16.msra.mxu0 0
      %446 = vmatprep.mubr.bf16.mxu0 0
      %447 = vmatmul.mubr.bf16.gmra.mrb[0].mxu0 %v408
      %v448 = vpop.f32.mrb[0].mxu0
      %v449 = vadd.f32 0.0, %v448
      %v450 = vpop.f32.mrb[0].mxu0
      %v451 = vpop.f32.mrb[0].mxu0
      %v452 = vpop.f32.mrb[0].mxu0
      %453 = vdwg.mxu0
      %v454 = vsel %vm406, %v396, 0
      %v457 = vsel %vm410, %v397, 0
      %459 = vmatprep.subr.bf16.mxu0 0
      %460 = vmatpush1.bf16.msra.mxu0 %v457
      %461 = vmatprep.subr.bf16.mxu0 0
      %462 = vmatpush1.bf16.msra.mxu0 0
      %463 = vmatprep.subr.bf16.mxu0 0
      %464 = vmatpush1.bf16.msra.mxu0 0
      %465 = vmatprep.subr.bf16.mxu0 0
      %466 = vmatpush1.bf16.msra.mxu0 0
      %467 = vmatprep.subr.bf16.mxu0 0
      %468 = vmatpush1.bf16.msra.mxu0 0
      %469 = vmatprep.subr.bf16.mxu0 0
      %470 = vmatpush1.bf16.msra.mxu0 0
      %471 = vmatprep.subr.bf16.mxu0 0
      %472 = vmatpush1.bf16.msra.mxu0 0
      %473 = vmatprep.subr.bf16.mxu0 0
      %474 = vmatpush1.bf16.msra.mxu0 0
      %475 = vmatprep.subr.bf16.mxu0 0
      %476 = vmatpush1.bf16.msra.mxu0 0
      %477 = vmatprep.subr.bf16.mxu0 0
      %478 = vmatpush1.bf16.msra.mxu0 0
      %479 = vmatprep.subr.bf16.mxu0 0
      %480 = vmatpush1.bf16.msra.mxu0 0
      %481 = vmatprep.subr.bf16.mxu0 0
      %482 = vmatpush1.bf16.msra.mxu0 0
      %483 = vmatprep.subr.bf16.mxu0 0
      %484 = vmatpush1.bf16.msra.mxu0 0
      %485 = vmatprep.subr.bf16.mxu0 0
      %486 = vmatpush1.bf16.msra.mxu0 0
      %487 = vmatprep.subr.bf16.mxu0 0
      %488 = vmatpush1.bf16.msra.mxu0 0
      %489 = vmatprep.subr.bf16.mxu0 0
      %490 = vmatpush1.bf16.msra.mxu0 0
      %491 = vmatprep.mubr.bf16.mxu0 0
      %492 = vmatmul.mubr.bf16.gmra.mrb[0].mxu0 %v454
      %v493 = vpop.f32.mrb[0].mxu0
      %v494 = vadd.f32 %v449, %v493
      %v495 = vpop.f32.mrb[0].mxu0
      %v496 = vpop.f32.mrb[0].mxu0
      %v497 = vpop.f32.mrb[0].mxu0
      %498 = vdwg.mxu0
      %s499 = scalar_lea.vmem %s3, 4
      %v500 = vld [vmem:[%s499] sm:$0x3]
      %v502 = vrot.slane %v396, 1
      %v504 = vsel %vm406, %v502, 0
      %v507 = vsel %vm410, %v500, 0
      %509 = vmatprep.subr.bf16.mxu0 0
      %510 = vmatpush1.bf16.msra.mxu0 %v507
      %511 = vmatprep.subr.bf16.mxu0 0
      %512 = vmatpush1.bf16.msra.mxu0 0
      %513 = vmatprep.subr.bf16.mxu0 0
      %514 = vmatpush1.bf16.msra.mxu0 0
      %515 = vmatprep.subr.bf16.mxu0 0
      %516 = vmatpush1.bf16.msra.mxu0 0
      %517 = vmatprep.subr.bf16.mxu0 0
      %518 = vmatpush1.bf16.msra.mxu0 0
      %519 = vmatprep.subr.bf16.mxu0 0
      %520 = vmatpush1.bf16.msra.mxu0 0
      %521 = vmatprep.subr.bf16.mxu0 0
      %522 = vmatpush1.bf16.msra.mxu0 0
      %523 = vmatprep.subr.bf16.mxu0 0
      %524 = vmatpush1.bf16.msra.mxu0 0
      %525 = vmatprep.subr.bf16.mxu0 0
      %526 = vmatpush1.bf16.msra.mxu0 0
      %527 = vmatprep.subr.bf16.mxu0 0
      %528 = vmatpush1.bf16.msra.mxu0 0
      %529 = vmatprep.subr.bf16.mxu0 0
      %530 = vmatpush1.bf16.msra.mxu0 0
      %531 = vmatprep.subr.bf16.mxu0 0
      %532 = vmatpush1.bf16.msra.mxu0 0
      %533 = vmatprep.subr.bf16.mxu0 0
      %534 = vmatpush1.bf16.msra.mxu0 0
      %535 = vmatprep.subr.bf16.mxu0 0
      %536 = vmatpush1.bf16.msra.mxu0 0
      %537 = vmatprep.subr.bf16.mxu0 0
      %538 = vmatpush1.bf16.msra.mxu0 0
      %539 = vmatprep.subr.bf16.mxu0 0
      %540 = vmatpush1.bf16.msra.mxu0 0
      %541 = vmatprep.mubr.bf16.mxu0 0
      %542 = vmatmul.mubr.bf16.gmra.mrb[0].mxu0 %v504
      %v543 = vpop.f32.mrb[0].mxu0
      %v544 = vadd.f32 0.0, %v543
      %v545 = vpop.f32.mrb[0].mxu0
      %v546 = vpop.f32.mrb[0].mxu0
      %v547 = vpop.f32.mrb[0].mxu0
      %548 = vdwg.mxu0
      %v549 = vadd.f32 %v494, %v544
      %s550 = scalar_lea.vmem %s3, 6
      %v551 = vld [vmem:[%s550] sm:$0x3]
      %v552 = vrot.slane %v400, 1
      %v553 = vrot.slane %v402, 2
      %v554 = vor.u32 %v552, %v553
      %v556 = vsel %vm406, %v554, 0
      %v559 = vsel %vm410, %v551, 0
      %561 = vmatprep.subr.bf16.mxu0 0
      %562 = vmatpush1.bf16.msra.mxu0 %v559
      %563 = vmatprep.subr.bf16.mxu0 0
      %564 = vmatpush1.bf16.msra.mxu0 0
      %565 = vmatprep.subr.bf16.mxu0 0
      %566 = vmatpush1.bf16.msra.mxu0 0
      %567 = vmatprep.subr.bf16.mxu0 0
      %568 = vmatpush1.bf16.msra.mxu0 0
      %569 = vmatprep.subr.bf16.mxu0 0
      %570 = vmatpush1.bf16.msra.mxu0 0
      %571 = vmatprep.subr.bf16.mxu0 0
      %572 = vmatpush1.bf16.msra.mxu0 0
      %573 = vmatprep.subr.bf16.mxu0 0
      %574 = vmatpush1.bf16.msra.mxu0 0
      %575 = vmatprep.subr.bf16.mxu0 0
      %576 = vmatpush1.bf16.msra.mxu0 0
      %577 = vmatprep.subr.bf16.mxu0 0
      %578 = vmatpush1.bf16.msra.mxu0 0
      %579 = vmatprep.subr.bf16.mxu0 0
      %580 = vmatpush1.bf16.msra.mxu0 0
      %581 = vmatprep.subr.bf16.mxu0 0
      %582 = vmatpush1.bf16.msra.mxu0 0
      %583 = vmatprep.subr.bf16.mxu0 0
      %584 = vmatpush1.bf16.msra.mxu0 0
      %585 = vmatprep.subr.bf16.mxu0 0
      %586 = vmatpush1.bf16.msra.mxu0 0
      %587 = vmatprep.subr.bf16.mxu0 0
      %588 = vmatpush1.bf16.msra.mxu0 0
      %589 = vmatprep.subr.bf16.mxu0 0
      %590 = vmatpush1.bf16.msra.mxu0 0
      %591 = vmatprep.subr.bf16.mxu0 0
      %592 = vmatpush1.bf16.msra.mxu0 0
      %593 = vmatprep.mubr.bf16.mxu0 0
      %594 = vmatmul.mubr.bf16.gmra.mrb[0].mxu0 %v556
      %v595 = vpop.f32.mrb[0].mxu0
      %v596 = vadd.f32 0.0, %v595
      %v597 = vpop.f32.mrb[0].mxu0
      %v598 = vpop.f32.mrb[0].mxu0
      %v599 = vpop.f32.mrb[0].mxu0
      %600 = vdwg.mxu0
      %v601 = vadd.f32 %v549, %v596
      %s602 = scalar_lea.vmem %s3, 8
      %v603 = vld [vmem:[%s602] sm:$0x3]
      %v604 = vrot.slane %v396, 2
      %v606 = vsel %vm406, %v604, 0
      %v609 = vsel %vm410, %v603, 0
      %611 = vmatprep.subr.bf16.mxu0 0
      %612 = vmatpush1.bf16.msra.mxu0 %v609
      %613 = vmatprep.subr.bf16.mxu0 0
      %614 = vmatpush1.bf16.msra.mxu0 0
      %615 = vmatprep.subr.bf16.mxu0 0
      %616 = vmatpush1.bf16.msra.mxu0 0
      %617 = vmatprep.subr.bf16.mxu0 0
      %618 = vmatpush1.bf16.msra.mxu0 0
      %619 = vmatprep.subr.bf16.mxu0 0
      %620 = vmatpush1.bf16.msra.mxu0 0
      %621 = vmatprep.subr.bf16.mxu0 0
      %622 = vmatpush1.bf16.msra.mxu0 0
      %623 = vmatprep.subr.bf16.mxu0 0
      %624 = vmatpush1.bf16.msra.mxu0 0
      %625 = vmatprep.subr.bf16.mxu0 0
      %626 = vmatpush1.bf16.msra.mxu0 0
      %627 = vmatprep.subr.bf16.mxu0 0
      %628 = vmatpush1.bf16.msra.mxu0 0
      %629 = vmatprep.subr.bf16.mxu0 0
      %630 = vmatpush1.bf16.msra.mxu0 0
      %631 = vmatprep.subr.bf16.mxu0 0
      %632 = vmatpush1.bf16.msra.mxu0 0
      %633 = vmatprep.subr.bf16.mxu0 0
      %634 = vmatpush1.bf16.msra.mxu0 0
      %635 = vmatprep.subr.bf16.mxu0 0
      %636 = vmatpush1.bf16.msra.mxu0 0
      %637 = vmatprep.subr.bf16.mxu0 0
      %638 = vmatpush1.bf16.msra.mxu0 0
      %639 = vmatprep.subr.bf16.mxu0 0
      %640 = vmatpush1.bf16.msra.mxu0 0
      %641 = vmatprep.subr.bf16.mxu0 0
      %642 = vmatpush1.bf16.msra.mxu0 0
      %643 = vmatprep.mubr.bf16.mxu0 0
      %644 = vmatmul.mubr.bf16.gmra.mrb[0].mxu0 %v606
      %v645 = vpop.f32.mrb[0].mxu0
      %v646 = vadd.f32 0.0, %v645
      %v647 = vpop.f32.mrb[0].mxu0
      %v648 = vpop.f32.mrb[0].mxu0
      %v649 = vpop.f32.mrb[0].mxu0
      %650 = vdwg.mxu0
      %v651 = vadd.f32 %v601, %v646
      %v652 = vld [vmem:[%s4] sm:$0x1]
      %v654 = vlaneseq
      %v655 = vshrl.u32 %v654, 7
      %v656 = vsub.s32 0, %v655
      %v657 = vrot.slane %v652, %v656
      %v659 = vadd.f32 %v651, %v657
      %v660 = vmax.f32 %v659, 0.0
      %v661 = vpack.c.bf16 %v660, %v660
      %v662 = vld [vmem:[%s5] sm:$0xf]
      %v663 = vld [vmem:[%s5 + $0x4] sm:$0xf]
      %v664 = vld [vmem:[%s5 + $0x8] sm:$0xf]
      %v665 = vld [vmem:[%s5 + $0xc] sm:$0xf]
      %v666 = vld [vmem:[%s5 + $0x10] sm:$0xf]
      %v667 = vld [vmem:[%s5 + $0x14] sm:$0xf]
      %v668 = vld [vmem:[%s5 + $0x18] sm:$0xf]
      %v669 = vld [vmem:[%s5 + $0x1c] sm:$0xf]
      %v670 = vld [vmem:[%s5 + $0x20] sm:$0xf]
      %v671 = vld [vmem:[%s5 + $0x24] sm:$0xf]
      %v672 = vld [vmem:[%s5 + $0x28] sm:$0xf]
      %v673 = vld [vmem:[%s5 + $0x2c] sm:$0xf]
      %v674 = vld [vmem:[%s5 + $0x30] sm:$0xf]
      %v675 = vld [vmem:[%s5 + $0x34] sm:$0xf]
      %v676 = vld [vmem:[%s5 + $0x38] sm:$0xf]
      %v677 = vld [vmem:[%s5 + $0x3c] sm:$0xf]
      %v678 = vld [vmem:[%s6] sm:$0x1]
      %v680 = vlaneseq
      %v681 = vshrl.u32 %v680, 7
      %v682 = vsub.s32 0, %v681
      %v683 = vrot.slane %v678, %v682
      %v701 = vunpack.c.l.b16 %v662
      %v702 = vunpack.c.l.b16 %v663
      %v703 = vunpack.c.l.b16 %v664
      %v704 = vunpack.c.l.b16 %v665
      %v705 = vunpack.c.l.b16 %v666
      %v706 = vunpack.c.l.b16 %v667
      %v707 = vunpack.c.l.b16 %v668
      %v708 = vunpack.c.l.b16 %v669
      %v709 = vunpack.c.l.b16 %v670
      %v710 = vunpack.c.l.b16 %v671
      %v711 = vunpack.c.l.b16 %v672
      %v712 = vunpack.c.l.b16 %v673
      %v713 = vunpack.c.l.b16 %v674
      %v714 = vunpack.c.l.b16 %v675
      %v715 = vunpack.c.l.b16 %v676
      %v716 = vunpack.c.l.b16 %v677
      %v717 = vpack.c.b16 %v702, %v701
      %v718 = vpack.c.b16 %v704, %v703
      %v719 = vpack.c.b16 %v706, %v705
      %v720 = vpack.c.b16 %v708, %v707
      %v721 = vpack.c.b16 %v710, %v709
      %v722 = vpack.c.b16 %v712, %v711
      %v723 = vpack.c.b16 %v714, %v713
      %v724 = vpack.c.b16 %v716, %v715
      %733 = vmatprep.subr.bf16.mxu0 0
      %734 = vmatpush1.bf16.msra.mxu0 %v717
      %735 = vmatprep.subr.bf16.mxu0 0
      %736 = vmatpush1.bf16.msra.mxu0 %v718
      %737 = vmatprep.subr.bf16.mxu0 0
      %738 = vmatpush1.bf16.msra.mxu0 %v719
      %739 = vmatprep.subr.bf16.mxu0 0
      %740 = vmatpush1.bf16.msra.mxu0 %v720
      %741 = vmatprep.subr.bf16.mxu0 0
      %742 = vmatpush1.bf16.msra.mxu0 %v721
      %743 = vmatprep.subr.bf16.mxu0 0
      %744 = vmatpush1.bf16.msra.mxu0 %v722
      %745 = vmatprep.subr.bf16.mxu0 0
      %746 = vmatpush1.bf16.msra.mxu0 %v723
      %747 = vmatprep.subr.bf16.mxu0 0
      %748 = vmatpush1.bf16.msra.mxu0 %v724
      %749 = vmatprep.subr.bf16.mxu0 0
      %750 = vmatpush1.bf16.msra.mxu0 0
      %751 = vmatprep.subr.bf16.mxu0 0
      %752 = vmatpush1.bf16.msra.mxu0 0
      %753 = vmatprep.subr.bf16.mxu0 0
      %754 = vmatpush1.bf16.msra.mxu0 0
      %755 = vmatprep.subr.bf16.mxu0 0
      %756 = vmatpush1.bf16.msra.mxu0 0
      %757 = vmatprep.subr.bf16.mxu0 0
      %758 = vmatpush1.bf16.msra.mxu0 0
      %759 = vmatprep.subr.bf16.mxu0 0
      %760 = vmatpush1.bf16.msra.mxu0 0
      %761 = vmatprep.subr.bf16.mxu0 0
      %762 = vmatpush1.bf16.msra.mxu0 0
      %763 = vmatprep.subr.bf16.mxu0 0
      %764 = vmatpush1.bf16.msra.mxu0 0
      %765 = vmatprep.mubr.bf16.mxu0 0
      %766 = vmatmul.mubr.bf16.gmra.mrb[0].mxu0 %v661
      %v767 = vpop.f32.mrb[0].mxu0
      %v768 = vadd.f32 %v683, %v767
      %v769 = vpop.f32.mrb[0].mxu0
      %v770 = vpop.f32.mrb[0].mxu0
      %v771 = vpop.f32.mrb[0].mxu0
      %772 = vdwg.mxu0
      %773 = vst.msk [vmem:[%s365] sm:$0xff] %vm406, %v768
      %vm774 = vcmask 48160
      %775 = vst.msk [vmem:[%s365] sm:$0xff] %vm774, %v367
      %p776 = scmp.lt.s32.totalorder %s22, 1
      %s777 = scalar_select %p776, %s22, 1
      %p778 = scmp.lt.s32.totalorder %s23, 1
      %s779 = scalar_select %p778, %s23, 1
      %s780 = smul.addr %s777, 2
      %s781 = sadd.s32 %s779, %s780
      %s782 = smul.addr %s781, 8
      %s783 = scalar_lea.vmem %s7, %s782
      // Predicated region
      $region49: #{_copeft_forward.1} parent=47 // pred_check
        %p784 = pneg %p218
      $region50: #{_copeft_forward.1} parent=47 // pred_check_branch
        %786 = sbr.rel (%p784) target = $region52
      $region51: #{_copeft_forward.1} parent=47 // pred_region
        _
      $region52: #{_copeft_forward.1} parent=47 // pred_fallthru
        _
    $region48: #{_copeft_forward.1} parent=5 // pred_fallthru
      _
    %p787 = scmp.le.s32.totalorder 2, %s13
    // Predicated region
    $region53: #{_copeft_forward.1} parent=5 // pred_check
      %p788 = pneg %p787
    $region54: #{_copeft_forward.1} parent=5 // pred_check_branch
      %790 = sbr.rel (%p788) target = $region56
    $region55: #{_copeft_forward.1} parent=5 // pred_region
      %s791 = ssub.s32 %s13, 2
      // Predicated region
      $region57: #{_copeft_forward.1} parent=55 // pred_check
        %p792 = pneg %p224
      $region58: #{_copeft_forward.1} parent=55 // pred_check_branch
        %794 = sbr.rel (%p792) target = $region60
      $region59: #{_copeft_forward.1} parent=55 // pred_region
        %p795 = scmp.lt.s32.totalorder %s24, 1
        %s796 = scalar_select %p795, %s24, 1
        %p797 = scmp.lt.s32.totalorder %s25, 1
        %s798 = scalar_select %p797, %s25, 1
        %s799 = smul.addr %s796, 2
        %s800 = sadd.s32 %s798, %s799
        %s801 = smul.addr %s800, 8
        %s802 = scalar_lea.vmem %s7, %s801
      $region60: #{_copeft_forward.1} parent=55 // pred_fallthru
        _
    $region56: #{_copeft_forward.1} parent=5 // pred_fallthru
      _
  $region6: #{_copeft_forward.1} parent=0 // loop_footer
    %s17 = sadd.s32 1, %s13
  $region7: #{_copeft_forward.1} parent=0 // loop_footer_branch
    %12 = sbr.rel target = $region3
  $region8: #{_copeft_forward.1} parent=0 // loop_exit
    _

// kernel: _copeft_forward.1
$region0: #{_copeft_forward.1}
  #allocation0 [shape = 'u32[]', space=smem, size = 0x4, offset = 0x4, fixed_abs, tag = 'smem constant byte address 0x4 - core index']
  #allocation1 [shape = 'u32[144,128]{1,0:T(1,128)}', space=vmem, size = 0x12000, scoped, tag = 'internal scratch']
  %s0 = inlined_call_operand.vmem [shape: f32[2,16,6], index: 0, kind: input, shape index: {}]
  %s1 = inlined_call_operand.vmem [shape: bf16[2,2,2,4], index: 1, kind: input, shape index: {}]
  %s2 = inlined_call_operand.vmem [shape: bf16[2,2,2,4], index: 2, kind: input, shape index: {}]
  %s3 = inlined_call_operand.vmem [shape: bf16[5,4,128], index: 3, kind: input, shape index: {}]
  %s4 = inlined_call_operand.vmem [shape: f32[1,128], index: 4, kind: input, shape index: {}]
  %s5 = inlined_call_operand.vmem [shape: bf16[128,4], index: 5, kind: input, shape index: {}]
  %s6 = inlined_call_operand.vmem [shape: f32[1,4], index: 6, kind: input, shape index: {}]
  %s7 = inlined_call_operand.vmem [shape: f32[2,16,6], index: 7, kind: output, shape index: {}]
  %s8 = sld [smem:[#allocation0]]
  $region61: #{_copeft_forward.1} parent=0
    _
  %s10 = ssub.s32 1, %s8
  %s11 = scalar_select 0, %s10, %s8
  loop: start=0, step=1, limit=6
  $region2: #{_copeft_forward.1} parent=0 // loop_pre_header
    _
  $region3: #{_copeft_forward.1} parent=0 // loop_header
    %s13 = sphi 0, %s17
    %p14 = scmp.ge.s32.totalorder %s13, 6
    %s20 = sphi 0, %s32
    %s21 = sphi 0, %s28
    %s22 = sphi 0, %s20
    %s23 = sphi 0, %s21
    %s24 = sphi 0, %s22
    %s25 = sphi 0, %s23
    %s37 = sphi 0, %s39
    %s40 = sphi 0, %s37
    %s41 = sphi 0, %s40
    %s57 = sphi 0, %s41
    %s65 = sphi 0, %s67
    %s68 = sphi 0, %s65
    %s69 = sphi 0, %s68
    %s85 = sphi 0, %s69
    %s93 = sphi 0, %s95
    %s96 = sphi 0, %s93
    %s97 = sphi 0, %s96
    %s113 = sphi 0, %s97
    %s117 = sphi 0, %s117
    %s119 = sphi 0, %s117
    %s120 = sphi 0, %s119
    %s134 = sphi 0, %s120
    %s138 = sphi 0, %s138
    %s140 = sphi 0, %s138
    %s141 = sphi 0, %s140
    %s155 = sphi 0, %s141
    %s159 = sphi 0, %s159
    %s161 = sphi 0, %s159
    %s162 = sphi 0, %s161
    %s176 = sphi 0, %s162
    %s180 = sphi 0, %s180
    %s182 = sphi 0, %s180
    %s183 = sphi 0, %s182
    %s197 = sphi 0, %s183
    %s205 = sphi 0, %s207
    %s208 = sphi 0, %s205
    %s209 = sphi 0, %s208
    %s225 = sphi 0, %s209
  $region4: #{_copeft_forward.1} parent=0 // loop_header_branch
    %16 = sbr.rel (%p14) target = $region8
  $region5: #{_copeft_forward.1} parent=0 // loop_body
    %s18 = ssub.s32 %s13, 1
    %s19 = ssub.s32 %s13, 2
    %s26 = sadd.s32 1, %s21
    %p27 = scmp.ge.s32.totalorder %s26, 2
    %s28 = scalar_select %p27, 0, %s26
    %s29 = sadd.s32 1, %s20
    %s30 = scalar_select %p27, %s29, %s20
    %p31 = scmp.ge.s32.totalorder %s30, 2
    %s32 = scalar_select %p31, 0, %s30
    %s33 = ssub.s32 %s20, %s32
    %s34 = ssub.s32 %s21, %s28
    %s35 = sor.u32 %s33, %s34
    %p36 = scmp.eq.s32.totalorder %s35, 0
    %s38 = sadd.s32 %s37, 1
    %s39 = scalar_select %p36, %s37, %s38
    %p42 = pneg %p36
    %p43 = scmp.eq.s32.totalorder %s13, 3
    %p44 = por %p42, %p43
    %p45 = scmp.ne.s32.totalorder %s37, %s40
    %p46 = scmp.eq.s32.totalorder %s13, 0
    %p47 = por %p45, %p46
    %p48 = scmp.ne.s32.totalorder %s37, %s40
    %p49 = scmp.eq.s32.totalorder %s18, 3
    %p50 = por %p48, %p49
    %p51 = scmp.ne.s32.totalorder %s40, %s41
    %p52 = scmp.eq.s32.totalorder %s18, 0
    %p53 = por %p51, %p52
    %p54 = scmp.ne.s32.totalorder %s40, %s41
    %p55 = scmp.eq.s32.totalorder %s19, 3
    %p56 = por %p54, %p55
    %p58 = scmp.ne.s32.totalorder %s41, %s57
    %p59 = scmp.eq.s32.totalorder %s19, 0
    %p60 = por %p58, %p59
    %s61 = ssub.s32 %s20, %s32
    %s62 = ssub.s32 %s21, %s28
    %s63 = sor.u32 %s61, %s62
    %p64 = scmp.eq.s32.totalorder %s63, 0
    %s66 = sadd.s32 %s65, 1
    %s67 = scalar_select %p64, %s65, %s66
    %p70 = pneg %p64
    %p71 = scmp.eq.s32.totalorder %s13, 3
    %p72 = por %p70, %p71
    %p73 = scmp.ne.s32.totalorder %s65, %s68
    %p74 = scmp.eq.s32.totalorder %s13, 0
    %p75 = por %p73, %p74
    %p76 = scmp.ne.s32.totalorder %s65, %s68
    %p77 = scmp.eq.s32.totalorder %s18, 3
    %p78 = por %p76, %p77
    %p79 = scmp.ne.s32.totalorder %s68, %s69
    %p80 = scmp.eq.s32.totalorder %s18, 0
    %p81 = por %p79, %p80
    %p82 = scmp.ne.s32.totalorder %s68, %s69
    %p83 = scmp.eq.s32.totalorder %s19, 3
    %p84 = por %p82, %p83
    %p86 = scmp.ne.s32.totalorder %s69, %s85
    %p87 = scmp.eq.s32.totalorder %s19, 0
    %p88 = por %p86, %p87
    %s89 = ssub.s32 %s20, %s32
    %s90 = ssub.s32 %s21, %s28
    %s91 = sor.u32 %s89, %s90
    %p92 = scmp.eq.s32.totalorder %s91, 0
    %s94 = sadd.s32 %s93, 1
    %s95 = scalar_select %p92, %s93, %s94
    %p98 = pneg %p92
    %p99 = scmp.eq.s32.totalorder %s13, 3
    %p100 = por %p98, %p99
    %p101 = scmp.ne.s32.totalorder %s93, %s96
    %p102 = scmp.eq.s32.totalorder %s13, 0
    %p103 = por %p101, %p102
    %p104 = scmp.ne.s32.totalorder %s93, %s96
    %p105 = scmp.eq.s32.totalorder %s18, 3
    %p106 = por %p104, %p105
    %p107 = scmp.ne.s32.totalorder %s96, %s97
    %p108 = scmp.eq.s32.totalorder %s18, 0
    %p109 = por %p107, %p108
    %p110 = scmp.ne.s32.totalorder %s96, %s97
    %p111 = scmp.eq.s32.totalorder %s19, 3
    %p112 = por %p110, %p111
    %p114 = scmp.ne.s32.totalorder %s97, %s113
    %p115 = scmp.eq.s32.totalorder %s19, 0
    %p116 = por %p114, %p115
    %s118 = sadd.s32 %s117, 1
    %p121 = scmp.eq.s32.totalorder %s13, 3
    %p122 = scmp.ne.s32.totalorder %s117, %s119
    %p123 = scmp.eq.s32.totalorder %s13, 0
    %p124 = por %p122, %p123
    %p125 = scmp.ne.s32.totalorder %s117, %s119
    %p126 = scmp.eq.s32.totalorder %s18, 3
    %p127 = por %p125, %p126
    %p128 = scmp.ne.s32.totalorder %s119, %s120
    %p129 = scmp.eq.s32.totalorder %s18, 0
    %p130 = por %p128, %p129
    %p131 = scmp.ne.s32.totalorder %s119, %s120
    %p132 = scmp.eq.s32.totalorder %s19, 3
    %p133 = por %p131, %p132
    %p135 = scmp.ne.s32.totalorder %s120, %s134
    %p136 = scmp.eq.s32.totalorder %s19, 0
    %p137 = por %p135, %p136
    %s139 = sadd.s32 %s138, 1
    %p142 = scmp.eq.s32.totalorder %s13, 3
    %p143 = scmp.ne.s32.totalorder %s138, %s140
    %p144 = scmp.eq.s32.totalorder %s13, 0
    %p145 = por %p143, %p144
    %p146 = scmp.ne.s32.totalorder %s138, %s140
    %p147 = scmp.eq.s32.totalorder %s18, 3
    %p148 = por %p146, %p147
    %p149 = scmp.ne.s32.totalorder %s140, %s141
    %p150 = scmp.eq.s32.totalorder %s18, 0
    %p151 = por %p149, %p150
    %p152 = scmp.ne.s32.totalorder %s140, %s141
    %p153 = scmp.eq.s32.totalorder %s19, 3
    %p154 = por %p152, %p153
    %p156 = scmp.ne.s32.totalorder %s141, %s155
    %p157 = scmp.eq.s32.totalorder %s19, 0
    %p158 = por %p156, %p157
    %s160 = sadd.s32 %s159, 1
    %p163 = scmp.eq.s32.totalorder %s13, 3
    %p164 = scmp.ne.s32.totalorder %s159, %s161
    %p165 = scmp.eq.s32.totalorder %s13, 0
    %p166 = por %p164, %p165
    %p167 = scmp.ne.s32.totalorder %s159, %s161
    %p168 = scmp.eq.s32.totalorder %s18, 3
    %p169 = por %p167, %p168
    %p170 = scmp.ne.s32.totalorder %s161, %s162
    %p171 = scmp.eq.s32.totalorder %s18, 0
    %p172 = por %p170, %p171
    %p173 = scmp.ne.s32.totalorder %s161, %s162
    %p174 = scmp.eq.s32.totalorder %s19, 3
    %p175 = por %p173, %p174
    %p177 = scmp.ne.s32.totalorder %s162, %s176
    %p178 = scmp.eq.s32.totalorder %s19, 0
    %p179 = por %p177, %p178
    %s181 = sadd.s32 %s180, 1
    %p184 = scmp.eq.s32.totalorder %s13, 3
    %p185 = scmp.ne.s32.totalorder %s180, %s182
    %p186 = scmp.eq.s32.totalorder %s13, 0
    %p187 = por %p185, %p186
    %p188 = scmp.ne.s32.totalorder %s180, %s182
    %p189 = scmp.eq.s32.totalorder %s18, 3
    %p190 = por %p188, %p189
    %p191 = scmp.ne.s32.totalorder %s182, %s183
    %p192 = scmp.eq.s32.totalorder %s18, 0
    %p193 = por %p191, %p192
    %p194 = scmp.ne.s32.totalorder %s182, %s183
    %p195 = scmp.eq.s32.totalorder %s19, 3
    %p196 = por %p194, %p195
    %p198 = scmp.ne.s32.totalorder %s183, %s197
    %p199 = scmp.eq.s32.totalorder %s19, 0
    %p200 = por %p198, %p199
    %s201 = ssub.s32 %s20, %s32
    %s202 = ssub.s32 %s21, %s28
    %s203 = sor.u32 %s201, %s202
    %p204 = scmp.eq.s32.totalorder %s203, 0
    %s206 = sadd.s32 %s205, 1
    %s207 = scalar_select %p204, %s205, %s206
    %p210 = pneg %p204
    %p211 = scmp.eq.s32.totalorder %s13, 3
    %p212 = por %p210, %p211
    %p213 = scmp.ne.s32.totalorder %s205, %s208
    %p214 = scmp.eq.s32.totalorder %s13, 0
    %p215 = por %p213, %p214
    %p216 = scmp.ne.s32.totalorder %s205, %s208
    %p217 = scmp.eq.s32.totalorder %s18, 3
    %p218 = por %p216, %p217
    %p219 = scmp.ne.s32.totalorder %s208, %s209
    %p220 = scmp.eq.s32.totalorder %s18, 0
    %p221 = por %p219, %p220
    %p222 = scmp.ne.s32.totalorder %s208, %s209
    %p223 = scmp.eq.s32.totalorder %s19, 3
    %p224 = por %p222, %p223
    %p226 = scmp.ne.s32.totalorder %s209, %s225
    %p227 = scmp.eq.s32.totalorder %s19, 0
    %p228 = por %p226, %p227
    %p229 = scmp.le.s32.totalorder 1, %s13
    %p230 = scmp.lt.s32.totalorder %s13, 5
    %p231 = pnand %p229, %p230
    %p232 = pneg %p231
    // Predicated region
    $region9: #{_copeft_forward.1} parent=5 // pred_check
      _
    $region10: #{_copeft_forward.1} parent=5 // pred_check_branch
      %234 = sbr.rel (%p231) target = $region12
    $region11: #{_copeft_forward.1} parent=5 // pred_region
      %s235 = ssub.s32 %s13, 1
      // Predicated region
      $region13: #{_copeft_forward.1} parent=11 // pred_check
        %p236 = pneg %p130
      $region14: #{_copeft_forward.1} parent=11 // pred_check_branch
        %238 = sbr.rel (%p236) target = $region16
      $region15: #{_copeft_forward.1} parent=11 // pred_region
        _
      $region16: #{_copeft_forward.1} parent=11 // pred_fallthru
        _
      // Predicated region
      $region17: #{_copeft_forward.1} parent=11 // pred_check
        %p239 = pneg %p151
      $region18: #{_copeft_forward.1} parent=11 // pred_check_branch
        %241 = sbr.rel (%p239) target = $region20
      $region19: #{_copeft_forward.1} parent=11 // pred_region
        _
      $region20: #{_copeft_forward.1} parent=11 // pred_fallthru
        _
      // Predicated region
      $region21: #{_copeft_forward.1} parent=11 // pred_check
        %p242 = pneg %p172
      $region22: #{_copeft_forward.1} parent=11 // pred_check_branch
        %244 = sbr.rel (%p242) target = $region24
      $region23: #{_copeft_forward.1} parent=11 // pred_region
        _
      $region24: #{_copeft_forward.1} parent=11 // pred_fallthru
        _
      // Predicated region
      $region25: #{_copeft_forward.1} parent=11 // pred_check
        %p245 = pneg %p193
      $region26: #{_copeft_forward.1} parent=11 // pred_check_branch
        %247 = sbr.rel (%p245) target = $region28
      $region27: #{_copeft_forward.1} parent=11 // pred_region
        _
      $region28: #{_copeft_forward.1} parent=11 // pred_fallthru
        _
    $region12: #{_copeft_forward.1} parent=5 // pred_fallthru
      _
    %p248 = scmp.lt.s32.totalorder %s13, 4
    // Predicated region
    $region29: #{_copeft_forward.1} parent=5 // pred_check
      %p249 = pneg %p248
    $region30: #{_copeft_forward.1} parent=5 // pred_check_branch
      %251 = sbr.rel (%p249) target = $region32
    $region31: #{_copeft_forward.1} parent=5 // pred_region
      // Predicated region
      $region33: #{_copeft_forward.1} parent=31 // pred_check
        %p252 = pneg %p47
      $region34: #{_copeft_forward.1} parent=31 // pred_check_branch
        %254 = sbr.rel (%p252) target = $region36
      $region35: #{_copeft_forward.1} parent=31 // pred_region
        %p255 = scmp.lt.s32.totalorder %s20, 1
        %s256 = scalar_select %p255, %s20, 1
        %p257 = scmp.lt.s32.totalorder %s21, 1
        %s258 = scalar_select %p257, %s21, 1
        %s259 = smul.addr %s256, 2
        %s260 = sadd.s32 %s258, %s259
        %s261 = smul.addr %s260, 8
        %s262 = scalar_lea.vmem %s0, %s261
      $region36: #{_copeft_forward.1} parent=31 // pred_fallthru
        _
      // Predicated region
      $region37: #{_copeft_forward.1} parent=31 // pred_check
        %p263 = pneg %p75
      $region38: #{_copeft_forward.1} parent=31 // pred_check_branch
        %265 = sbr.rel (%p263) target = $region40
      $region39: #{_copeft_forward.1} parent=31 // pred_region
        %p266 = scmp.lt.s32.totalorder %s20, 1
        %s267 = scalar_select %p266, %s20, 1
        %p268 = scmp.lt.s32.totalorder %s21, 1
        %s269 = scalar_select %p268, %s21, 1
        %s270 = smul.addr %s267, 2
        %s271 = sadd.s32 %s269, %s270
        %s272 = scalar_lea.vmem %s1, %s271
      $region40: #{_copeft_forward.1} parent=31 // pred_fallthru
        _
      // Predicated region
      $region41: #{_copeft_forward.1} parent=31 // pred_check
        %p273 = pneg %p103
      $region42: #{_copeft_forward.1} parent=31 // pred_check_branch
        %275 = sbr.rel (%p273) target = $region44
      $region43: #{_copeft_forward.1} parent=31 // pred_region
        %p276 = scmp.lt.s32.totalorder %s20, 1
        %s277 = scalar_select %p276, %s20, 1
        %p278 = scmp.lt.s32.totalorder %s21, 1
        %s279 = scalar_select %p278, %s21, 1
        %s280 = smul.addr %s277, 2
        %s281 = sadd.s32 %s279, %s280
        %s282 = scalar_lea.vmem %s2, %s281
      $region44: #{_copeft_forward.1} parent=31 // pred_fallthru
        _
    $region32: #{_copeft_forward.1} parent=5 // pred_fallthru
      _
    %p283 = scmp.le.s32.totalorder 1, %s13
    %p284 = scmp.lt.s32.totalorder %s13, 5
    %p285 = pnand %p283, %p284
    %p286 = pneg %p285
    // Predicated region
    $region45: #{_copeft_forward.1} parent=5 // pred_check
      _
    $region46: #{_copeft_forward.1} parent=5 // pred_check_branch
      %288 = sbr.rel (%p285) target = $region48
    $region47: #{_copeft_forward.1} parent=5 // pred_region
      %s289 = ssub.s32 %s13, 1
      %p290 = scmp.lt.s32.totalorder %s22, 1
      %s291 = scalar_select %p290, %s22, 1
      %p292 = scmp.lt.s32.totalorder %s23, 1
      %s293 = scalar_select %p292, %s23, 1
      %s294 = smul.addr %s291, 2
      %s295 = sadd.s32 %s293, %s294
      %s296 = smul.addr %s295, 8
      %s297 = scalar_lea.vmem %s0, %s296
      %p298 = pneg %p53
      %p299 = pneg %p50
      %p300 = scmp.lt.s32.totalorder %s22, 1
      %s301 = scalar_select %p300, %s22, 1
      %p302 = scmp.lt.s32.totalorder %s23, 1
      %s303 = scalar_select %p302, %s23, 1
      %s304 = smul.addr %s301, 2
      %s305 = sadd.s32 %s303, %s304
      %s306 = scalar_lea.vmem %s1, %s305
      %p307 = pneg %p81
      %p308 = pneg %p78
      %p309 = scmp.lt.s32.totalorder %s22, 1
      %s310 = scalar_select %p309, %s22, 1
      %p311 = scmp.lt.s32.totalorder %s23, 1
      %s312 = scalar_select %p311, %s23, 1
      %s313 = smul.addr %s310, 2
      %s314 = sadd.s32 %s312, %s313
      %s315 = scalar_lea.vmem %s2, %s314
      %p316 = pneg %p109
      %p317 = pneg %p106
      %p318 = pneg %p130
      %p319 = pneg %p127
      %p320 = pneg %p151
      %p321 = pneg %p148
      %p322 = pneg %p172
      %p323 = pneg %p169
      %p324 = pneg %p193
      %p325 = pneg %p190
      %p326 = pneg %p221
      %p327 = pneg %p218
      %p328 = scmp.lt.s32.totalorder %s22, 1
      %s329 = scalar_select %p328, %s22, 1
      %p330 = scmp.lt.s32.totalorder %s23, 1
      %s331 = scalar_select %p330, %s23, 1
      %s332 = smul.addr %s329, 2
      %s333 = sadd.s32 %s331, %s332
      %s334 = smul.addr %s333, 8
      %s335 = scalar_lea.vmem %s7, %s334
      %p336 = scmp.lt.s32.totalorder %s22, 1
      %s337 = scalar_select %p336, %s22, 1
      %p338 = scmp.lt.s32.totalorder %s23, 1
      %s339 = scalar_select %p338, %s23, 1
      %s340 = smul.addr %s337, 2
      %s341 = sadd.s32 %s339, %s340
      %s342 = smul.addr %s341, 8
      %s343 = scalar_lea.vmem %s0, %s342
      %p344 = scmp.lt.s32.totalorder %s22, 1
      %s345 = scalar_select %p344, %s22, 1
      %p346 = scmp.lt.s32.totalorder %s23, 1
      %s347 = scalar_select %p346, %s23, 1
      %s348 = smul.addr %s345, 2
      %s349 = sadd.s32 %s347, %s348
      %s350 = scalar_lea.vmem %s1, %s349
      %p351 = scmp.lt.s32.totalorder %s22, 1
      %s352 = scalar_select %p351, %s22, 1
      %p353 = scmp.lt.s32.totalorder %s23, 1
      %s354 = scalar_select %p353, %s23, 1
      %s355 = smul.addr %s352, 2
      %s356 = sadd.s32 %s354, %s355
      %s357 = scalar_lea.vmem %s2, %s356
      %p358 = scmp.lt.s32.totalorder %s22, 1
      %s359 = scalar_select %p358, %s22, 1
      %p360 = scmp.lt.s32.totalorder %s23, 1
      %s361 = scalar_select %p360, %s23, 1
      %s362 = smul.addr %s359, 2
      %s363 = sadd.s32 %s361, %s362
      %s364 = smul.addr %s363, 8
      %s365 = scalar_lea.vmem %s7, %s364
      %v367 = vld [vmem:[%s343] sm:$0xff]
      %v368 = vpack.c.bf16 %v367, %v367
      %v369 = vld [vmem:[%s350] sm:$0x1]
      %v370 = vld [vmem:[%s357] sm:$0x1]
      %v372 = vrot.slane %v368, 7
      %v374 = vcombine.low %v370, %v370
      %v376 = vunpack.c.l.s4 1966171168
      %v377 = vunpack.c.0.s8 %v376
      %v378 = vlaneseq
      %v379 = vshrl.u32 %v378, 7
      %v380 = vsub.s32 %v377, %v379
      %v381 = vrot.slane %v374, %v380
      %v383 = vunpack.c.l.s4 1966171168
      %v384 = vunpack.c.0.s8 %v383
      %v385 = vlaneseq
      %v386 = vshrl.u32 %v385, 7
      %v387 = vsub.s32 %v384, %v386
      %v388 = vrot.slane %v381, %v387
      %v389 = vcombine.low %v388, %v388
      %vm390 = vcmask 1040384
      %v393 = vsel %vm390, %v369, %v372
      %vm394 = vcmask 1044480
      %v396 = vsel %vm394, %v393, %v389
      %v397 = vld [vmem:[%s3] sm:$0x3]
      %s398 = scalar_lea.vmem %s3, 2
      %v399 = vld [vmem:[%s398] sm:$0x3]
      %v400 = vshrl.u32 %v396, 16
      %v402 = vshll.u32 %v396, 16
      %v404 = vrot.slane %v402, 1
      %v405 = vor.u32 %v400, %v404
      %vm406 = vcmask 31744
      %v408 = vsel %vm406, %v405, 0
      %vm410 = vcmask 1041408
      %v412 = vsel %vm410, %v399, 0
      %414 = vmatprep.subr.bf16.mxu0 0
      %415 = vmatpush1.bf16.msra.mxu0 %v412
      %416 = vmatprep.subr.bf16.mxu0 0
      %417 = vmatpush1.bf16.msra.mxu0 0
      %418 = vmatprep.subr.bf16.mxu0 0
      %419 = vmatpush1.bf16.msra.mxu0 0
      %420 = vmatprep.subr.bf16.mxu0 0
      %421 = vmatpush1.bf16.msra.mxu0 0
      %422 = vmatprep.subr.bf16.mxu0 0
      %423 = vmatpush1.bf16.msra.mxu0 0
      %424 = vmatprep.subr.bf16.mxu0 0
      %425 = vmatpush1.bf16.msra.mxu0 0
      %426 = vmatprep.subr.bf16.mxu0 0
      %427 = vmatpush1.bf16.msra.mxu0 0
      %428 = vmatprep.subr.bf16.mxu0 0
      %429 = vmatpush1.bf16.msra.mxu0 0
      %430 = vmatprep.subr.bf16.mxu0 0
      %431 = vmatpush1.bf16.msra.mxu0 0
      %432 = vmatprep.subr.bf16.mxu0 0
      %433 = vmatpush1.bf16.msra.mxu0 0
      %434 = vmatprep.subr.bf16.mxu0 0
      %435 = vmatpush1.bf16.msra.mxu0 0
      %436 = vmatprep.subr.bf16.mxu0 0
      %437 = vmatpush1.bf16.msra.mxu0 0
      %438 = vmatprep.subr.bf16.mxu0 0
      %439 = vmatpush1.bf16.msra.mxu0 0
      %440 = vmatprep.subr.bf16.mxu0 0
      %441 = vmatpush1.bf16.msra.mxu0 0
      %442 = vmatprep.subr.bf16.mxu0 0
      %443 = vmatpush1.bf16.msra.mxu0 0
      %444 = vmatprep.subr.bf16.mxu0 0
      %445 = vmatpush1.bf16.msra.mxu0 0
      %446 = vmatprep.mubr.bf16.mxu0 0
      %447 = vmatmul.mubr.bf16.gmra.mrb[0].mxu0 %v408
      %v448 = vpop.f32.mrb[0].mxu0
      %v449 = vadd.f32 0.0, %v448
      %v450 = vpop.f32.mrb[0].mxu0
      %v451 = vpop.f32.mrb[0].mxu0
      %v452 = vpop.f32.mrb[0].mxu0
      %453 = vdwg.mxu0
      %v454 = vsel %vm406, %v396, 0
      %v457 = vsel %vm410, %v397, 0
      %459 = vmatprep.subr.bf16.mxu0 0
      %460 = vmatpush1.bf16.msra.mxu0 %v457
      %461 = vmatprep.subr.bf16.mxu0 0
      %462 = vmatpush1.bf16.msra.mxu0 0
      %463 = vmatprep.subr.bf16.mxu0 0
      %464 = vmatpush1.bf16.msra.mxu0 0
      %465 = vmatprep.subr.bf16.mxu0 0
      %466 = vmatpush1.bf16.msra.mxu0 0
      %467 = vmatprep.subr.bf16.mxu0 0
      %468 = vmatpush1.bf16.msra.mxu0 0
      %469 = vmatprep.subr.bf16.mxu0 0
      %470 = vmatpush1.bf16.msra.mxu0 0
      %471 = vmatprep.subr.bf16.mxu0 0
      %472 = vmatpush1.bf16.msra.mxu0 0
      %473 = vmatprep.subr.bf16.mxu0 0
      %474 = vmatpush1.bf16.msra.mxu0 0
      %475 = vmatprep.subr.bf16.mxu0 0
      %476 = vmatpush1.bf16.msra.mxu0 0
      %477 = vmatprep.subr.bf16.mxu0 0
      %478 = vmatpush1.bf16.msra.mxu0 0
      %479 = vmatprep.subr.bf16.mxu0 0
      %480 = vmatpush1.bf16.msra.mxu0 0
      %481 = vmatprep.subr.bf16.mxu0 0
      %482 = vmatpush1.bf16.msra.mxu0 0
      %483 = vmatprep.subr.bf16.mxu0 0
      %484 = vmatpush1.bf16.msra.mxu0 0
      %485 = vmatprep.subr.bf16.mxu0 0
      %486 = vmatpush1.bf16.msra.mxu0 0
      %487 = vmatprep.subr.bf16.mxu0 0
      %488 = vmatpush1.bf16.msra.mxu0 0
      %489 = vmatprep.subr.bf16.mxu0 0
      %490 = vmatpush1.bf16.msra.mxu0 0
      %491 = vmatprep.mubr.bf16.mxu0 0
      %492 = vmatmul.mubr.bf16.gmra.mrb[0].mxu0 %v454
      %v493 = vpop.f32.mrb[0].mxu0
      %v494 = vadd.f32 %v449, %v493
      %v495 = vpop.f32.mrb[0].mxu0
      %v496 = vpop.f32.mrb[0].mxu0
      %v497 = vpop.f32.mrb[0].mxu0
      %498 = vdwg.mxu0
      %s499 = scalar_lea.vmem %s3, 4
      %v500 = vld [vmem:[%s499] sm:$0x3]
      %v502 = vrot.slane %v396, 1
      %v504 = vsel %vm406, %v502, 0
      %v507 = vsel %vm410, %v500, 0
      %509 = vmatprep.subr.bf16.mxu0 0
      %510 = vmatpush1.bf16.msra.mxu0 %v507
      %511 = vmatprep.subr.bf16.mxu0 0
      %512 = vmatpush1.bf16.msra.mxu0 0
      %513 = vmatprep.subr.bf16.mxu0 0
      %514 = vmatpush1.bf16.msra.mxu0 0
      %515 = vmatprep.subr.bf16.mxu0 0
      %516 = vmatpush1.bf16.msra.mxu0 0
      %517 = vmatprep.subr.bf16.mxu0 0
      %518 = vmatpush1.bf16.msra.mxu0 0
      %519 = vmatprep.subr.bf16.mxu0 0
      %520 = vmatpush1.bf16.msra.mxu0 0
      %521 = vmatprep.subr.bf16.mxu0 0
      %522 = vmatpush1.bf16.msra.mxu0 0
      %523 = vmatprep.subr.bf16.mxu0 0
      %524 = vmatpush1.bf16.msra.mxu0 0
      %525 = vmatprep.subr.bf16.mxu0 0
      %526 = vmatpush1.bf16.msra.mxu0 0
      %527 = vmatprep.subr.bf16.mxu0 0
      %528 = vmatpush1.bf16.msra.mxu0 0
      %529 = vmatprep.subr.bf16.mxu0 0
      %530 = vmatpush1.bf16.msra.mxu0 0
      %531 = vmatprep.subr.bf16.mxu0 0
      %532 = vmatpush1.bf16.msra.mxu0 0
      %533 = vmatprep.subr.bf16.mxu0 0
      %534 = vmatpush1.bf16.msra.mxu0 0
      %535 = vmatprep.subr.bf16.mxu0 0
      %536 = vmatpush1.bf16.msra.mxu0 0
      %537 = vmatprep.subr.bf16.mxu0 0
      %538 = vmatpush1.bf16.msra.mxu0 0
      %539 = vmatprep.subr.bf16.mxu0 0
      %540 = vmatpush1.bf16.msra.mxu0 0
      %541 = vmatprep.mubr.bf16.mxu0 0
      %542 = vmatmul.mubr.bf16.gmra.mrb[0].mxu0 %v504
      %v543 = vpop.f32.mrb[0].mxu0
      %v544 = vadd.f32 0.0, %v543
      %v545 = vpop.f32.mrb[0].mxu0
      %v546 = vpop.f32.mrb[0].mxu0
      %v547 = vpop.f32.mrb[0].mxu0
      %548 = vdwg.mxu0
      %v549 = vadd.f32 %v494, %v544
      %s550 = scalar_lea.vmem %s3, 6
      %v551 = vld [vmem:[%s550] sm:$0x3]
      %v552 = vrot.slane %v400, 1
      %v553 = vrot.slane %v402, 2
      %v554 = vor.u32 %v552, %v553
      %v556 = vsel %vm406, %v554, 0
      %v559 = vsel %vm410, %v551, 0
      %561 = vmatprep.subr.bf16.mxu0 0
      %562 = vmatpush1.bf16.msra.mxu0 %v559
      %563 = vmatprep.subr.bf16.mxu0 0
      %564 = vmatpush1.bf16.msra.mxu0 0
      %565 = vmatprep.subr.bf16.mxu0 0
      %566 = vmatpush1.bf16.msra.mxu0 0
      %567 = vmatprep.subr.bf16.mxu0 0
      %568 = vmatpush1.bf16.msra.mxu0 0
      %569 = vmatprep.subr.bf16.mxu0 0
      %570 = vmatpush1.bf16.msra.mxu0 0
      %571 = vmatprep.subr.bf16.mxu0 0
      %572 = vmatpush1.bf16.msra.mxu0 0
      %573 = vmatprep.subr.bf16.mxu0 0
      %574 = vmatpush1.bf16.msra.mxu0 0
      %575 = vmatprep.subr.bf16.mxu0 0
      %576 = vmatpush1.bf16.msra.mxu0 0
      %577 = vmatprep.subr.bf16.mxu0 0
      %578 = vmatpush1.bf16.msra.mxu0 0
      %579 = vmatprep.subr.bf16.mxu0 0
      %580 = vmatpush1.bf16.msra.mxu0 0
      %581 = vmatprep.subr.bf16.mxu0 0
      %582 = vmatpush1.bf16.msra.mxu0 0
      %583 = vmatprep.subr.bf16.mxu0 0
      %584 = vmatpush1.bf16.msra.mxu0 0
      %585 = vmatprep.subr.bf16.mxu0 0
      %586 = vmatpush1.bf16.msra.mxu0 0
      %587 = vmatprep.subr.bf16.mxu0 0
      %588 = vmatpush1.bf16.msra.mxu0 0
      %589 = vmatprep.subr.bf16.mxu0 0
      %590 = vmatpush1.bf16.msra.mxu0 0
      %591 = vmatprep.subr.bf16.mxu0 0
      %592 = vmatpush1.bf16.msra.mxu0 0
      %593 = vmatprep.mubr.bf16.mxu0 0
      %594 = vmatmul.mubr.bf16.gmra.mrb[0].mxu0 %v556
      %v595 = vpop.f32.mrb[0].mxu0
      %v596 = vadd.f32 0.0, %v595
      %v597 = vpop.f32.mrb[0].mxu0
      %v598 = vpop.f32.mrb[0].mxu0
      %v599 = vpop.f32.mrb[0].mxu0
      %600 = vdwg.mxu0
      %v601 = vadd.f32 %v549, %v596
      %s602 = scalar_lea.vmem %s3, 8
      %v603 = vld [vmem:[%s602] sm:$0x3]
      %v604 = vrot.slane %v396, 2
      %v606 = vsel %vm406, %v604, 0
      %v609 = vsel %vm410, %v603, 0
      %611 = vmatprep.subr.bf16.mxu0 0
      %612 = vmatpush1.bf16.msra.mxu0 %v609
      %613 = vmatprep.subr.bf16.mxu0 0
      %614 = vmatpush1.bf16.msra.mxu0 0
      %615 = vmatprep.subr.bf16.mxu0 0
      %616 = vmatpush1.bf16.msra.mxu0 0
      %617 = vmatprep.subr.bf16.mxu0 0
      %618 = vmatpush1.bf16.msra.mxu0 0
      %619 = vmatprep.subr.bf16.mxu0 0
      %620 = vmatpush1.bf16.msra.mxu0 0
      %621 = vmatprep.subr.bf16.mxu0 0
      %622 = vmatpush1.bf16.msra.mxu0 0
      %623 = vmatprep.subr.bf16.mxu0 0
      %624 = vmatpush1.bf16.msra.mxu0 0
      %625 = vmatprep.subr.bf16.mxu0 0
      %626 = vmatpush1.bf16.msra.mxu0 0
      %627 = vmatprep.subr.bf16.mxu0 0
      %628 = vmatpush1.bf16.msra.mxu0 0
      %629 = vmatprep.subr.bf16.mxu0 0
      %630 = vmatpush1.bf16.msra.mxu0 0
      %631 = vmatprep.subr.bf16.mxu0 0
      %632 = vmatpush1.bf16.msra.mxu0 0
      %633 = vmatprep.subr.bf16.mxu0 0
      %634 = vmatpush1.bf16.msra.mxu0 0
      %635 = vmatprep.subr.bf16.mxu0 0
      %636 = vmatpush1.bf16.msra.mxu0 0
      %637 = vmatprep.subr.bf16.mxu0 0
      %638 = vmatpush1.bf16.msra.mxu0 0
      %639 = vmatprep.subr.bf16.mxu0 0
      %640 = vmatpush1.bf16.msra.mxu0 0
      %641 = vmatprep.subr.bf16.mxu0 0
      %642 = vmatpush1.bf16.msra.mxu0 0
      %643 = vmatprep.mubr.bf16.mxu0 0
      %644 = vmatmul.mubr.bf16.gmra.mrb[0].mxu0 %v606
      %v645 = vpop.f32.mrb[0].mxu0
      %v646 = vadd.f32 0.0, %v645
      %v647 = vpop.f32.mrb[0].mxu0
      %v648 = vpop.f32.mrb[0].mxu0
      %v649 = vpop.f32.mrb[0].mxu0
      %650 = vdwg.mxu0
      %v651 = vadd.f32 %v601, %v646
      %v652 = vld [vmem:[%s4] sm:$0x1]
      %v654 = vlaneseq
      %v655 = vshrl.u32 %v654, 7
      %v656 = vsub.s32 0, %v655
      %v657 = vrot.slane %v652, %v656
      %v659 = vadd.f32 %v651, %v657
      %v660 = vmax.f32 %v659, 0.0
      %v661 = vpack.c.bf16 %v660, %v660
      %v662 = vld [vmem:[%s5] sm:$0xf]
      %v663 = vld [vmem:[%s5 + $0x4] sm:$0xf]
      %v664 = vld [vmem:[%s5 + $0x8] sm:$0xf]
      %v665 = vld [vmem:[%s5 + $0xc] sm:$0xf]
      %v666 = vld [vmem:[%s5 + $0x10] sm:$0xf]
      %v667 = vld [vmem:[%s5 + $0x14] sm:$0xf]
      %v668 = vld [vmem:[%s5 + $0x18] sm:$0xf]
      %v669 = vld [vmem:[%s5 + $0x1c] sm:$0xf]
      %v670 = vld [vmem:[%s5 + $0x20] sm:$0xf]
      %v671 = vld [vmem:[%s5 + $0x24] sm:$0xf]
      %v672 = vld [vmem:[%s5 + $0x28] sm:$0xf]
      %v673 = vld [vmem:[%s5 + $0x2c] sm:$0xf]
      %v674 = vld [vmem:[%s5 + $0x30] sm:$0xf]
      %v675 = vld [vmem:[%s5 + $0x34] sm:$0xf]
      %v676 = vld [vmem:[%s5 + $0x38] sm:$0xf]
      %v677 = vld [vmem:[%s5 + $0x3c] sm:$0xf]
      %v678 = vld [vmem:[%s6] sm:$0x1]
      %v680 = vlaneseq
      %v681 = vshrl.u32 %v680, 7
      %v682 = vsub.s32 0, %v681
      %v683 = vrot.slane %v678, %v682
      %v701 = vunpack.c.l.b16 %v662
      %v702 = vunpack.c.l.b16 %v663
      %v703 = vunpack.c.l.b16 %v664
      %v704 = vunpack.c.l.b16 %v665
      %v705 = vunpack.c.l.b16 %v666
      %v706 = vunpack.c.l.b16 %v667
      %v707 = vunpack.c.l.b16 %v668
      %v708 = vunpack.c.l.b16 %v669
      %v709 = vunpack.c.l.b16 %v670
      %v710 = vunpack.c.l.b16 %v671
      %v711 = vunpack.c.l.b16 %v672
      %v712 = vunpack.c.l.b16 %v673
      %v713 = vunpack.c.l.b16 %v674
      %v714 = vunpack.c.l.b16 %v675
      %v715 = vunpack.c.l.b16 %v676
      %v716 = vunpack.c.l.b16 %v677
      %v717 = vpack.c.b16 %v702, %v701
      %v718 = vpack.c.b16 %v704, %v703
      %v719 = vpack.c.b16 %v706, %v705
      %v720 = vpack.c.b16 %v708, %v707
      %v721 = vpack.c.b16 %v710, %v709
      %v722 = vpack.c.b16 %v712, %v711
      %v723 = vpack.c.b16 %v714, %v713
      %v724 = vpack.c.b16 %v716, %v715
      %733 = vmatprep.subr.bf16.mxu0 0
      %734 = vmatpush1.bf16.msra.mxu0 %v717
      %735 = vmatprep.subr.bf16.mxu0 0
      %736 = vmatpush1.bf16.msra.mxu0 %v718
      %737 = vmatprep.subr.bf16.mxu0 0
      %738 = vmatpush1.bf16.msra.mxu0 %v719
      %739 = vmatprep.subr.bf16.mxu0 0
      %740 = vmatpush1.bf16.msra.mxu0 %v720
      %741 = vmatprep.subr.bf16.mxu0 0
      %742 = vmatpush1.bf16.msra.mxu0 %v721
      %743 = vmatprep.subr.bf16.mxu0 0
      %744 = vmatpush1.bf16.msra.mxu0 %v722
      %745 = vmatprep.subr.bf16.mxu0 0
      %746 = vmatpush1.bf16.msra.mxu0 %v723
      %747 = vmatprep.subr.bf16.mxu0 0
      %748 = vmatpush1.bf16.msra.mxu0 %v724
      %749 = vmatprep.subr.bf16.mxu0 0
      %750 = vmatpush1.bf16.msra.mxu0 0
      %751 = vmatprep.subr.bf16.mxu0 0
      %752 = vmatpush1.bf16.msra.mxu0 0
      %753 = vmatprep.subr.bf16.mxu0 0
      %754 = vmatpush1.bf16.msra.mxu0 0
      %755 = vmatprep.subr.bf16.mxu0 0
      %756 = vmatpush1.bf16.msra.mxu0 0
      %757 = vmatprep.subr.bf16.mxu0 0
      %758 = vmatpush1.bf16.msra.mxu0 0
      %759 = vmatprep.subr.bf16.mxu0 0
      %760 = vmatpush1.bf16.msra.mxu0 0
      %761 = vmatprep.subr.bf16.mxu0 0
      %762 = vmatpush1.bf16.msra.mxu0 0
      %763 = vmatprep.subr.bf16.mxu0 0
      %764 = vmatpush1.bf16.msra.mxu0 0
      %765 = vmatprep.mubr.bf16.mxu0 0
      %766 = vmatmul.mubr.bf16.gmra.mrb[0].mxu0 %v661
      %v767 = vpop.f32.mrb[0].mxu0
      %v768 = vadd.f32 %v683, %v767
      %v769 = vpop.f32.mrb[0].mxu0
      %v770 = vpop.f32.mrb[0].mxu0
      %v771 = vpop.f32.mrb[0].mxu0
      %772 = vdwg.mxu0
      %773 = vst.msk [vmem:[%s365] sm:$0xff] %vm406, %v768
      %vm774 = vcmask 48160
      %775 = vst.msk [vmem:[%s365] sm:$0xff] %vm774, %v367
      %p776 = scmp.lt.s32.totalorder %s22, 1
      %s777 = scalar_select %p776, %s22, 1
      %p778 = scmp.lt.s32.totalorder %s23, 1
      %s779 = scalar_select %p778, %s23, 1
      %s780 = smul.addr %s777, 2
      %s781 = sadd.s32 %s779, %s780
      %s782 = smul.addr %s781, 8
      %s783 = scalar_lea.vmem %s7, %s782
      // Predicated region
      $region49: #{_copeft_forward.1} parent=47 // pred_check
        %p784 = pneg %p218
      $region50: #{_copeft_forward.1} parent=47 // pred_check_branch
        %786 = sbr.rel (%p784) target = $region52
      $region51: #{_copeft_forward.1} parent=47 // pred_region
        _
      $region52: #{_copeft_forward.1} parent=47 // pred_fallthru
        _
    $region48: #{_copeft_forward.1} parent=5 // pred_fallthru
      _
    %p787 = scmp.le.s32.totalorder 2, %s13
    // Predicated region
    $region53: #{_copeft_forward.1} parent=5 // pred_check
      %p788 = pneg %p787
    $region54: #{_copeft_forward.1} parent=5 // pred_check_branch
      %790 = sbr.rel (%p788) target = $region56
    $region55: #{_copeft_forward.1} parent=5 // pred_region
      %s791 = ssub.s32 %s13, 2
      // Predicated region
      $region57: #{_copeft_forward.1} parent=55 // pred_check
        %p792 = pneg %p224
      $region58: #{_copeft_forward.1} parent=55 // pred_check_branch
        %794 = sbr.rel (%p792) target = $region60
      $region59: #{_copeft_forward.1} parent=55 // pred_region
        %p795 = scmp.lt.s32.totalorder %s24, 1
        %s796 = scalar_select %p795, %s24, 1
        %p797 = scmp.lt.s32.totalorder %s25, 1
        %s798 = scalar_select %p797, %s25, 1
        %s799 = smul.addr %s796, 2
        %s800 = sadd.s32 %s798, %s799
        %s801 = smul.addr %s800, 8
        %s802 = scalar_lea.vmem %s7, %s801
      $region60: #{_copeft_forward.1} parent=55 // pred_fallthru
        _
    $region56: #{_copeft_forward.1} parent=5 // pred_fallthru
      _
  $region6: #{_copeft_forward.1} parent=0 // loop_footer
    %s17 = sadd.s32 1, %s13
  $region7: #{_copeft_forward.1} parent=0 // loop_footer_branch
    %12 = sbr.rel target = $region3
  $region8: #{_copeft_forward.1} parent=0 // loop_exit
    _

</llo_original>
